<compile_context>
chip_gen: v6e
topology: v6e:2x2x1
jax: 0.10.0
libtpu: 0.0.40
codegen_flags: <defaults>
</compile_context>

<pallas_src>
import jax
import jax.numpy as jnp
from jax.experimental import pallas as pl
from jax.experimental.pallas import tpu as pltpu


def _marine_kernel(idx_ref, node_ref, rela_ref, link_ref, loss_ref):
    idx = idx_ref[...]            # [tb, 5] int32: (k, i, j, neg_i, neg_j)
    node_t = node_ref[...]        # [Nn, D] f32, VMEM-resident
    rela_t = rela_ref[...]        # [Nr, D] f32, VMEM-resident
    link_t = link_ref[...]        # [Nr, D] f32, VMEM-resident

    tb = idx.shape[0]
    n_node = node_t.shape[0]
    n_rela = rela_t.shape[0]

    iota_n = jax.lax.broadcasted_iota(jnp.int32, (tb, n_node), 1)
    iota_r = jax.lax.broadcasted_iota(jnp.int32, (tb, n_rela), 1)

    def gather_node(col):
        onehot = jnp.where(iota_n == idx[:, col:col + 1], 1.0, 0.0)
        return jnp.dot(onehot, node_t, preferred_element_type=jnp.float32)

    # rela/link share idx_k -> build the one-hot once.
    onehot_k = jnp.where(iota_r == idx[:, 0:1], 1.0, 0.0)
    rela_k = jnp.dot(onehot_k, rela_t, preferred_element_type=jnp.float32)
    link_k = jnp.dot(onehot_k, link_t, preferred_element_type=jnp.float32)

    pos_i = gather_node(1)
    pos_j = gather_node(2)
    neg_i = gather_node(3)
    neg_j = gather_node(4)

    # Single fused cross-lane reduction (relaError + linkError).
    z = jnp.sum((neg_j - neg_i - pos_j + pos_i) * rela_k
                + (neg_i * neg_j - pos_i * pos_j) * link_k,
                axis=1, keepdims=True)                       # [tb, 1]

    # numerically stable softplus: max(z, 0) + log(1 + exp(-|z|))
    loss_ref[...] = jnp.maximum(z, 0.0) + jnp.log(1.0 + jnp.exp(-jnp.abs(z)))


def marine_forward(batch_vector, node_emb, rela_emb, link_emb, *, tb=None):
    """Marine.forward, alpha == 0 path.

    batch_vector: int [B, 5] = (k, i, j, neg_i_idx, neg_j_idx)
    Returns per-example loss, float32 [B].
    """
    bv = batch_vector.astype(jnp.int32)
    B, n_cols = bv.shape
    n_node, D = node_emb.shape
    n_rela, _ = rela_emb.shape

    # Tile size: big tiles amortize the ~0.35us per-grid-step overhead, but
    # keep >= 2 grid steps (when the batch allows) so v7x's second TensorCore
    # is not idle under dimension_semantics=("parallel",).
    if tb is None:
        tb = 1024
        while tb > 128 and pl.cdiv(B, tb) < 2:
            tb //= 2
    n_steps = pl.cdiv(B, tb)
    b_pad = n_steps * tb
    if b_pad != B:
        bv = jnp.concatenate(
            [bv, jnp.zeros((b_pad - B, n_cols), jnp.int32)], axis=0)

    node_emb = node_emb.astype(jnp.float32)
    rela_emb = rela_emb.astype(jnp.float32)
    link_emb = link_emb.astype(jnp.float32)

    grid_spec = pltpu.PrefetchScalarGridSpec(
        num_scalar_prefetch=0,
        grid=(n_steps,),
        in_specs=[
            pl.BlockSpec((tb, n_cols), lambda b: (b, 0)),
            # Tables: constant block index => fetched from HBM once, resident.
            pl.BlockSpec((n_node, D), lambda b: (0, 0)),
            pl.BlockSpec((n_rela, D), lambda b: (0, 0)),
            pl.BlockSpec((n_rela, D), lambda b: (0, 0)),
        ],
        out_specs=pl.BlockSpec((tb, 1), lambda b: (b, 0)),
    )
    out = pl.pallas_call(
        _marine_kernel,
        out_shape=jax.ShapeDtypeStruct((b_pad, 1), jnp.float32),
        grid_spec=grid_spec,
        compiler_params=pltpu.CompilerParams(
            dimension_semantics=("parallel",),
            vmem_limit_bytes=32 * 1024 * 1024),
    )(bv, node_emb, rela_emb, link_emb)
    return out[:B, 0]

# TODO(synk): alpha != 0 attribute-regularization branch (Linear transform +
#             L2 norms vs a frozen attribute embedding) not implemented;
#             this covers the default Marine(alpha=0.0) forward path.
# TODO(synk): for node tables too large for VMEM, switch node_emb to
#             memory_space=pl.ANY and row-gather via manual make_async_copy
#             double-buffering driven by scalar-prefetched indices.


def _reference(batch_vector, node_emb, rela_emb, link_emb):
    idx_k = batch_vector[:, 0]
    link_k = link_emb[idx_k]
    rela_k = rela_emb[idx_k]
    pos_i = node_emb[batch_vector[:, 1]]
    pos_j = node_emb[batch_vector[:, 2]]
    neg_i = node_emb[batch_vector[:, 3]]
    neg_j = node_emb[batch_vector[:, 4]]
    rela_err = jnp.sum((neg_j - neg_i - pos_j + pos_i) * rela_k, axis=1)
    link_err = jnp.sum((neg_i * neg_j - pos_i * pos_j) * link_k, axis=1)
    return jax.nn.softplus(rela_err + link_err)


if __name__ == "__main__":
    key = jax.random.PRNGKey(0)
    k_node, k_rela, k_link, k_k, k_ij, k_neg = jax.random.split(key, 6)

    node_count, rela_count, dim = 64, 8, 128   # dimension=128 is Marine default
    batch = 256

    # nn.Embedding default init: N(0, 1)
    node_emb = jax.random.normal(k_node, (node_count, dim), jnp.float32)
    rela_emb = jax.random.normal(k_rela, (rela_count, dim), jnp.float32)
    link_emb = jax.random.normal(k_link, (rela_count, dim), jnp.float32)

    # batchVector rows: [k, i, j, neg_i_idx, neg_j_idx]
    kk = jax.random.randint(k_k, (batch, 1), 0, rela_count, jnp.int32)
    ij = jax.random.randint(k_ij, (batch, 2), 0, node_count, jnp.int32)
    ng = jax.random.randint(k_neg, (batch, 2), 0, node_count, jnp.int32)
    batch_vector = jnp.concatenate([kk, ij, ng], axis=1)

    loss = jax.block_until_ready(
        marine_forward(batch_vector, node_emb, rela_emb, link_emb))

    ref = _reference(batch_vector, node_emb, rela_emb, link_emb)
    assert loss.shape == (batch,)
    assert jnp.allclose(loss, ref, atol=1e-4, rtol=1e-4), \
        float(jnp.max(jnp.abs(loss - ref)))
    print("KERNEL_OK")
</pallas_src>

<mosaic_0001>
module attributes {stable_mosaic.version = 11 : i64} {
  func.func @_marine_kernel(%arg0: i32, %arg1: memref<128x5xi32, #tpu.memory_space<vmem>>, %arg2: memref<64x128xf32, #tpu.memory_space<vmem>>, %arg3: memref<8x128xf32, #tpu.memory_space<vmem>>, %arg4: memref<8x128xf32, #tpu.memory_space<vmem>>, %arg5: memref<128x1xf32, #tpu.memory_space<vmem>>) attributes {dimension_semantics = [#tpu.dimension_semantics<parallel>], iteration_bounds = array<i64: 2>, scalar_prefetch = 0 : i64, scratch_operands = 0 : i64, tpu.core_type = #tpu.core_type<tc>, window_params = [{transform_indices = @transform_0, window_bounds = array<i64: 128, 5>}, {pipeline_mode = #tpu.pipeline_mode<synchronous>, transform_indices = @transform_1, window_bounds = array<i64: 64, 128>}, {pipeline_mode = #tpu.pipeline_mode<synchronous>, transform_indices = @transform_2, window_bounds = array<i64: 8, 128>}, {pipeline_mode = #tpu.pipeline_mode<synchronous>, transform_indices = @transform_3, window_bounds = array<i64: 8, 128>}, {transform_indices = @transform_4, window_bounds = array<i64: 128, 1>}]} {
    %c0 = arith.constant 0 : index
    %c0_0 = arith.constant 0 : index
    %0 = vector.load %arg1[%c0, %c0_0] : memref<128x5xi32, #tpu.memory_space<vmem>>, vector<128x5xi32>
    %c0_1 = arith.constant 0 : index
    %c0_2 = arith.constant 0 : index
    %1 = vector.load %arg2[%c0_1, %c0_2] : memref<64x128xf32, #tpu.memory_space<vmem>>, vector<64x128xf32>
    %c0_3 = arith.constant 0 : index
    %c0_4 = arith.constant 0 : index
    %2 = vector.load %arg3[%c0_3, %c0_4] : memref<8x128xf32, #tpu.memory_space<vmem>>, vector<8x128xf32>
    %c0_5 = arith.constant 0 : index
    %c0_6 = arith.constant 0 : index
    %3 = vector.load %arg4[%c0_5, %c0_6] : memref<8x128xf32, #tpu.memory_space<vmem>>, vector<8x128xf32>
    %4 = tpu.iota {dimensions = array<i32: 1>} : vector<128x64xi32>
    %5 = tpu.iota {dimensions = array<i32: 1>} : vector<128x8xi32>
    %6 = vector.extract_strided_slice %0 {offsets = [0, 0], sizes = [128, 1], strides = [1, 1]} : vector<128x5xi32> to vector<128x1xi32>
    %7 = vector.broadcast %6 : vector<128x1xi32> to vector<128x8xi32>
    %8 = arith.cmpi eq, %5, %7 : vector<128x8xi32>
    %cst = arith.constant 1.000000e+00 : f32
    %cst_7 = arith.constant 0.000000e+00 : f32
    %9 = vector.broadcast %cst : f32 to vector<128x8xf32>
    %10 = vector.broadcast %cst_7 : f32 to vector<128x8xf32>
    %11 = arith.select %8, %9, %10 : vector<128x8xi1>, vector<128x8xf32>
    %cst_8 = arith.constant dense<0.000000e+00> : vector<128x128xf32>
    %12 = tpu.matmul %11, %2, %cst_8 {dimension_numbers = #tpu.dot_dimension_numbers<[1], [0], [0], [1], [0, 0, 1, 1], [], []>} : vector<128x8xf32>, vector<8x128xf32>, vector<128x128xf32> -> vector<128x128xf32>
    %cst_9 = arith.constant dense<0.000000e+00> : vector<128x128xf32>
    %13 = tpu.matmul %11, %3, %cst_9 {dimension_numbers = #tpu.dot_dimension_numbers<[1], [0], [0], [1], [0, 0, 1, 1], [], []>} : vector<128x8xf32>, vector<8x128xf32>, vector<128x128xf32> -> vector<128x128xf32>
    %14 = vector.extract_strided_slice %0 {offsets = [0, 1], sizes = [128, 1], strides = [1, 1]} : vector<128x5xi32> to vector<128x1xi32>
    %15 = vector.broadcast %14 : vector<128x1xi32> to vector<128x64xi32>
    %16 = arith.cmpi eq, %4, %15 : vector<128x64xi32>
    %cst_10 = arith.constant 1.000000e+00 : f32
    %cst_11 = arith.constant 0.000000e+00 : f32
    %17 = vector.broadcast %cst_10 : f32 to vector<128x64xf32>
    %18 = vector.broadcast %cst_11 : f32 to vector<128x64xf32>
    %19 = arith.select %16, %17, %18 : vector<128x64xi1>, vector<128x64xf32>
    %cst_12 = arith.constant dense<0.000000e+00> : vector<128x128xf32>
    %20 = tpu.matmul %19, %1, %cst_12 {dimension_numbers = #tpu.dot_dimension_numbers<[1], [0], [0], [1], [0, 0, 1, 1], [], []>} : vector<128x64xf32>, vector<64x128xf32>, vector<128x128xf32> -> vector<128x128xf32>
    %21 = vector.extract_strided_slice %0 {offsets = [0, 2], sizes = [128, 1], strides = [1, 1]} : vector<128x5xi32> to vector<128x1xi32>
    %22 = vector.broadcast %21 : vector<128x1xi32> to vector<128x64xi32>
    %23 = arith.cmpi eq, %4, %22 : vector<128x64xi32>
    %cst_13 = arith.constant 1.000000e+00 : f32
    %cst_14 = arith.constant 0.000000e+00 : f32
    %24 = vector.broadcast %cst_13 : f32 to vector<128x64xf32>
    %25 = vector.broadcast %cst_14 : f32 to vector<128x64xf32>
    %26 = arith.select %23, %24, %25 : vector<128x64xi1>, vector<128x64xf32>
    %cst_15 = arith.constant dense<0.000000e+00> : vector<128x128xf32>
    %27 = tpu.matmul %26, %1, %cst_15 {dimension_numbers = #tpu.dot_dimension_numbers<[1], [0], [0], [1], [0, 0, 1, 1], [], []>} : vector<128x64xf32>, vector<64x128xf32>, vector<128x128xf32> -> vector<128x128xf32>
    %28 = vector.extract_strided_slice %0 {offsets = [0, 3], sizes = [128, 1], strides = [1, 1]} : vector<128x5xi32> to vector<128x1xi32>
    %29 = vector.broadcast %28 : vector<128x1xi32> to vector<128x64xi32>
    %30 = arith.cmpi eq, %4, %29 : vector<128x64xi32>
    %cst_16 = arith.constant 1.000000e+00 : f32
    %cst_17 = arith.constant 0.000000e+00 : f32
    %31 = vector.broadcast %cst_16 : f32 to vector<128x64xf32>
    %32 = vector.broadcast %cst_17 : f32 to vector<128x64xf32>
    %33 = arith.select %30, %31, %32 : vector<128x64xi1>, vector<128x64xf32>
    %cst_18 = arith.constant dense<0.000000e+00> : vector<128x128xf32>
    %34 = tpu.matmul %33, %1, %cst_18 {dimension_numbers = #tpu.dot_dimension_numbers<[1], [0], [0], [1], [0, 0, 1, 1], [], []>} : vector<128x64xf32>, vector<64x128xf32>, vector<128x128xf32> -> vector<128x128xf32>
    %35 = vector.extract_strided_slice %0 {offsets = [0, 4], sizes = [128, 1], strides = [1, 1]} : vector<128x5xi32> to vector<128x1xi32>
    %36 = vector.broadcast %35 : vector<128x1xi32> to vector<128x64xi32>
    %37 = arith.cmpi eq, %4, %36 : vector<128x64xi32>
    %cst_19 = arith.constant 1.000000e+00 : f32
    %cst_20 = arith.constant 0.000000e+00 : f32
    %38 = vector.broadcast %cst_19 : f32 to vector<128x64xf32>
    %39 = vector.broadcast %cst_20 : f32 to vector<128x64xf32>
    %40 = arith.select %37, %38, %39 : vector<128x64xi1>, vector<128x64xf32>
    %cst_21 = arith.constant dense<0.000000e+00> : vector<128x128xf32>
    %41 = tpu.matmul %40, %1, %cst_21 {dimension_numbers = #tpu.dot_dimension_numbers<[1], [0], [0], [1], [0, 0, 1, 1], [], []>} : vector<128x64xf32>, vector<64x128xf32>, vector<128x128xf32> -> vector<128x128xf32>
    %42 = arith.subf %41, %34 : vector<128x128xf32>
    %43 = arith.subf %42, %27 : vector<128x128xf32>
    %44 = arith.addf %43, %20 : vector<128x128xf32>
    %45 = arith.mulf %44, %12 : vector<128x128xf32>
    %46 = arith.mulf %34, %41 : vector<128x128xf32>
    %47 = arith.mulf %20, %27 : vector<128x128xf32>
    %48 = arith.subf %46, %47 : vector<128x128xf32>
    %49 = arith.mulf %48, %13 : vector<128x128xf32>
    %50 = arith.addf %45, %49 : vector<128x128xf32>
    %cst_22 = arith.constant dense<0.000000e+00> : vector<128xf32>
    %51 = vector.multi_reduction <add>, %50, %cst_22 [1] : vector<128x128xf32> to vector<128xf32>
    %52 = vector.shape_cast %51 : vector<128xf32> to vector<128x1xf32>
    %cst_23 = arith.constant 0.000000e+00 : f32
    %53 = vector.broadcast %cst_23 : f32 to vector<128x1xf32>
    %54 = arith.maximumf %52, %53 : vector<128x1xf32>
    %55 = math.absf %52 : vector<128x1xf32>
    %cst_24 = arith.constant 0.000000e+00 : f32
    %56 = vector.broadcast %cst_24 : f32 to vector<128x1xf32>
    %57 = arith.subf %56, %55 : vector<128x1xf32>
    %58 = math.exp %57 : vector<128x1xf32>
    %cst_25 = arith.constant 1.000000e+00 : f32
    %59 = vector.broadcast %cst_25 : f32 to vector<128x1xf32>
    %60 = arith.addf %59, %58 : vector<128x1xf32>
    %61 = math.log %60 : vector<128x1xf32>
    %62 = arith.addf %54, %61 : vector<128x1xf32>
    %c0_26 = arith.constant 0 : index
    %c0_27 = arith.constant 0 : index
    %63 = vector.load %arg5[%c0_26, %c0_27] : memref<128x1xf32, #tpu.memory_space<vmem>>, vector<128x1xf32>
    tpu.vector_store %arg5[%c0_26, %c0_27], %62 {strides = array<i32>} : memref<128x1xf32, #tpu.memory_space<vmem>>, vector<128x1xf32>,
    return
  }
  func.func @transform_0(%arg0: i32) -> (i32, i32) {
    %c0_i32 = arith.constant 0 : i32
    %c0_i32_0 = arith.constant 0 : i32
    return %arg0, %c0_i32 : i32, i32
  }
  func.func @transform_1(%arg0: i32) -> (i32, i32) {
    %c0_i32 = arith.constant 0 : i32
    %c0_i32_0 = arith.constant 0 : i32
    %c0_i32_1 = arith.constant 0 : i32
    return %c0_i32, %c0_i32_0 : i32, i32
  }
  func.func @transform_2(%arg0: i32) -> (i32, i32) {
    %c0_i32 = arith.constant 0 : i32
    %c0_i32_0 = arith.constant 0 : i32
    %c0_i32_1 = arith.constant 0 : i32
    return %c0_i32, %c0_i32_0 : i32, i32
  }
  func.func @transform_3(%arg0: i32) -> (i32, i32) {
    %c0_i32 = arith.constant 0 : i32
    %c0_i32_0 = arith.constant 0 : i32
    %c0_i32_1 = arith.constant 0 : i32
    return %c0_i32, %c0_i32_0 : i32, i32
  }
  func.func @transform_4(%arg0: i32) -> (i32, i32) {
    %c0_i32 = arith.constant 0 : i32
    %c0_i32_0 = arith.constant 0 : i32
    return %arg0, %c0_i32 : i32, i32
  }
}

</mosaic_0001>

<llo_original>
// kernel: tpu_custom_call.1
$region0: #{tpu_custom_call.1}
  #allocation0 [shape = 'u32[]', space=smem, size = 0x4, offset = 0x4, fixed_abs, tag = 'smem constant byte address 0x4 - core index']
  #allocation1 [shape = 'u32[144,128]{1,0:T(1,128)}', space=vmem, size = 0x12000, scoped, tag = 'internal scratch']
  %s0 = inlined_call_operand.vmem [shape: s32[256,5], index: 0, kind: input, shape index: {}]
  %s1 = inlined_call_operand.vmem [shape: f32[64,128], index: 1, kind: input, shape index: {}]
  %s2 = inlined_call_operand.vmem [shape: f32[8,128], index: 2, kind: input, shape index: {}]
  %s3 = inlined_call_operand.vmem [shape: f32[8,128], index: 3, kind: input, shape index: {}]
  %s4 = inlined_call_operand.vmem [shape: f32[256,1], index: 4, kind: output, shape index: {}]
  %s5 = sld [smem:[#allocation0]]
  $region49: #{tpu_custom_call.1} parent=0
    _
  %s7 = ssub.s32 1, %s5
  %s8 = scalar_select 0, %s7, %s5
  loop: start=0, step=1, limit=4
  $region2: #{tpu_custom_call.1} parent=0 // loop_pre_header
    _
  $region3: #{tpu_custom_call.1} parent=0 // loop_header
    %s10 = sphi 0, %s14
    %p11 = scmp.ge.s32.totalorder %s10, 4
    %s20 = sphi 0, %s22
    %s23 = sphi 0, %s20
    %s24 = sphi 0, %s23
    %s40 = sphi 0, %s24
    %s44 = sphi 0, %s44
    %s46 = sphi 0, %s44
    %s47 = sphi 0, %s46
    %s61 = sphi 0, %s47
    %s65 = sphi 0, %s65
    %s67 = sphi 0, %s65
    %s68 = sphi 0, %s67
    %s82 = sphi 0, %s68
    %s86 = sphi 0, %s86
    %s88 = sphi 0, %s86
    %s89 = sphi 0, %s88
    %s103 = sphi 0, %s89
    %s109 = sphi 0, %s111
    %s112 = sphi 0, %s109
    %s113 = sphi 0, %s112
    %s129 = sphi 0, %s113
  $region4: #{tpu_custom_call.1} parent=0 // loop_header_branch
    %13 = sbr.rel (%p11) target = $region8
  $region5: #{tpu_custom_call.1} parent=0 // loop_body
    %s15 = ssub.s32 %s10, 1
    %s16 = ssub.s32 %s10, 2
    %s17 = sadd.s32 %s10, 1
    %s18 = ssub.s32 %s10, %s17
    %p19 = scmp.eq.s32.totalorder %s18, 0
    %s21 = sadd.s32 %s20, 1
    %s22 = scalar_select %p19, %s20, %s21
    %p25 = pneg %p19
    %p26 = scmp.eq.s32.totalorder %s10, 1
    %p27 = por %p25, %p26
    %p28 = scmp.ne.s32.totalorder %s20, %s23
    %p29 = scmp.eq.s32.totalorder %s10, 0
    %p30 = por %p28, %p29
    %p31 = scmp.ne.s32.totalorder %s20, %s23
    %p32 = scmp.eq.s32.totalorder %s15, 1
    %p33 = por %p31, %p32
    %p34 = scmp.ne.s32.totalorder %s23, %s24
    %p35 = scmp.eq.s32.totalorder %s15, 0
    %p36 = por %p34, %p35
    %p37 = scmp.ne.s32.totalorder %s23, %s24
    %p38 = scmp.eq.s32.totalorder %s16, 1
    %p39 = por %p37, %p38
    %p41 = scmp.ne.s32.totalorder %s24, %s40
    %p42 = scmp.eq.s32.totalorder %s16, 0
    %p43 = por %p41, %p42
    %s45 = sadd.s32 %s44, 1
    %p48 = scmp.eq.s32.totalorder %s10, 1
    %p49 = scmp.ne.s32.totalorder %s44, %s46
    %p50 = scmp.eq.s32.totalorder %s10, 0
    %p51 = por %p49, %p50
    %p52 = scmp.ne.s32.totalorder %s44, %s46
    %p53 = scmp.eq.s32.totalorder %s15, 1
    %p54 = por %p52, %p53
    %p55 = scmp.ne.s32.totalorder %s46, %s47
    %p56 = scmp.eq.s32.totalorder %s15, 0
    %p57 = por %p55, %p56
    %p58 = scmp.ne.s32.totalorder %s46, %s47
    %p59 = scmp.eq.s32.totalorder %s16, 1
    %p60 = por %p58, %p59
    %p62 = scmp.ne.s32.totalorder %s47, %s61
    %p63 = scmp.eq.s32.totalorder %s16, 0
    %p64 = por %p62, %p63
    %s66 = sadd.s32 %s65, 1
    %p69 = scmp.eq.s32.totalorder %s10, 1
    %p70 = scmp.ne.s32.totalorder %s65, %s67
    %p71 = scmp.eq.s32.totalorder %s10, 0
    %p72 = por %p70, %p71
    %p73 = scmp.ne.s32.totalorder %s65, %s67
    %p74 = scmp.eq.s32.totalorder %s15, 1
    %p75 = por %p73, %p74
    %p76 = scmp.ne.s32.totalorder %s67, %s68
    %p77 = scmp.eq.s32.totalorder %s15, 0
    %p78 = por %p76, %p77
    %p79 = scmp.ne.s32.totalorder %s67, %s68
    %p80 = scmp.eq.s32.totalorder %s16, 1
    %p81 = por %p79, %p80
    %p83 = scmp.ne.s32.totalorder %s68, %s82
    %p84 = scmp.eq.s32.totalorder %s16, 0
    %p85 = por %p83, %p84
    %s87 = sadd.s32 %s86, 1
    %p90 = scmp.eq.s32.totalorder %s10, 1
    %p91 = scmp.ne.s32.totalorder %s86, %s88
    %p92 = scmp.eq.s32.totalorder %s10, 0
    %p93 = por %p91, %p92
    %p94 = scmp.ne.s32.totalorder %s86, %s88
    %p95 = scmp.eq.s32.totalorder %s15, 1
    %p96 = por %p94, %p95
    %p97 = scmp.ne.s32.totalorder %s88, %s89
    %p98 = scmp.eq.s32.totalorder %s15, 0
    %p99 = por %p97, %p98
    %p100 = scmp.ne.s32.totalorder %s88, %s89
    %p101 = scmp.eq.s32.totalorder %s16, 1
    %p102 = por %p100, %p101
    %p104 = scmp.ne.s32.totalorder %s89, %s103
    %p105 = scmp.eq.s32.totalorder %s16, 0
    %p106 = por %p104, %p105
    %s107 = ssub.s32 %s10, %s17
    %p108 = scmp.eq.s32.totalorder %s107, 0
    %s110 = sadd.s32 %s109, 1
    %s111 = scalar_select %p108, %s109, %s110
    %p114 = pneg %p108
    %p115 = scmp.eq.s32.totalorder %s10, 1
    %p116 = por %p114, %p115
    %p117 = scmp.ne.s32.totalorder %s109, %s112
    %p118 = scmp.eq.s32.totalorder %s10, 0
    %p119 = por %p117, %p118
    %p120 = scmp.ne.s32.totalorder %s109, %s112
    %p121 = scmp.eq.s32.totalorder %s15, 1
    %p122 = por %p120, %p121
    %p123 = scmp.ne.s32.totalorder %s112, %s113
    %p124 = scmp.eq.s32.totalorder %s15, 0
    %p125 = por %p123, %p124
    %p126 = scmp.ne.s32.totalorder %s112, %s113
    %p127 = scmp.eq.s32.totalorder %s16, 1
    %p128 = por %p126, %p127
    %p130 = scmp.ne.s32.totalorder %s113, %s129
    %p131 = scmp.eq.s32.totalorder %s16, 0
    %p132 = por %p130, %p131
    %p133 = scmp.le.s32.totalorder 1, %s10
    %p134 = scmp.lt.s32.totalorder %s10, 3
    %p135 = pnand %p133, %p134
    %p136 = pneg %p135
    // Predicated region
    $region9: #{tpu_custom_call.1} parent=5 // pred_check
      _
    $region10: #{tpu_custom_call.1} parent=5 // pred_check_branch
      %138 = sbr.rel (%p135) target = $region12
    $region11: #{tpu_custom_call.1} parent=5 // pred_region
      %s139 = ssub.s32 %s10, 1
      // Predicated region
      $region13: #{tpu_custom_call.1} parent=11 // pred_check
        %p140 = pneg %p57
      $region14: #{tpu_custom_call.1} parent=11 // pred_check_branch
        %142 = sbr.rel (%p140) target = $region16
      $region15: #{tpu_custom_call.1} parent=11 // pred_region
        _
      $region16: #{tpu_custom_call.1} parent=11 // pred_fallthru
        _
      // Predicated region
      $region17: #{tpu_custom_call.1} parent=11 // pred_check
        %p143 = pneg %p78
      $region18: #{tpu_custom_call.1} parent=11 // pred_check_branch
        %145 = sbr.rel (%p143) target = $region20
      $region19: #{tpu_custom_call.1} parent=11 // pred_region
        _
      $region20: #{tpu_custom_call.1} parent=11 // pred_fallthru
        _
      // Predicated region
      $region21: #{tpu_custom_call.1} parent=11 // pred_check
        %p146 = pneg %p99
      $region22: #{tpu_custom_call.1} parent=11 // pred_check_branch
        %148 = sbr.rel (%p146) target = $region24
      $region23: #{tpu_custom_call.1} parent=11 // pred_region
        _
      $region24: #{tpu_custom_call.1} parent=11 // pred_fallthru
        _
    $region12: #{tpu_custom_call.1} parent=5 // pred_fallthru
      _
    %p149 = scmp.lt.s32.totalorder %s10, 2
    // Predicated region
    $region25: #{tpu_custom_call.1} parent=5 // pred_check
      %p150 = pneg %p149
    $region26: #{tpu_custom_call.1} parent=5 // pred_check_branch
      %152 = sbr.rel (%p150) target = $region28
    $region27: #{tpu_custom_call.1} parent=5 // pred_region
      // Predicated region
      $region29: #{tpu_custom_call.1} parent=27 // pred_check
        %p153 = pneg %p30
      $region30: #{tpu_custom_call.1} parent=27 // pred_check_branch
        %155 = sbr.rel (%p153) target = $region32
      $region31: #{tpu_custom_call.1} parent=27 // pred_region
        %s156 = smul.u32 16, %s10
        %p157 = scmp.lt.s32.totalorder %s156, 31
        %s158 = scalar_select %p157, %s156, 31
        %s159 = smul.addr %s158, 8
        %s160 = scalar_lea.vmem %s0, %s159
        %s161 = smul.u32 16, %s10
      $region32: #{tpu_custom_call.1} parent=27 // pred_fallthru
        _
    $region28: #{tpu_custom_call.1} parent=5 // pred_fallthru
      _
    %p162 = scmp.le.s32.totalorder 1, %s10
    %p163 = scmp.lt.s32.totalorder %s10, 3
    %p164 = pnand %p162, %p163
    %p165 = pneg %p164
    // Predicated region
    $region33: #{tpu_custom_call.1} parent=5 // pred_check
      _
    $region34: #{tpu_custom_call.1} parent=5 // pred_check_branch
      %167 = sbr.rel (%p164) target = $region36
    $region35: #{tpu_custom_call.1} parent=5 // pred_region
      %s168 = ssub.s32 %s10, 1
      %s169 = smul.u32 16, %s15
      %p170 = scmp.lt.s32.totalorder %s169, 31
      %s171 = scalar_select %p170, %s169, 31
      %s172 = smul.addr %s171, 8
      %s173 = scalar_lea.vmem %s0, %s172
      %p174 = pneg %p36
      %p175 = pneg %p33
      %p176 = pneg %p57
      %p177 = pneg %p54
      %p178 = pneg %p78
      %p179 = pneg %p75
      %p180 = pneg %p99
      %p181 = pneg %p96
      %p182 = pneg %p125
      %p183 = pneg %p122
      %s184 = smul.u32 16, %s15
      %p185 = scmp.lt.s32.totalorder %s184, 31
      %s186 = scalar_select %p185, %s184, 31
      %s187 = smul.addr %s186, 8
      %s188 = scalar_lea.vmem %s4, %s187
      %s189 = smul.u32 16, %s15
      %p190 = scmp.lt.s32.totalorder %s189, 31
      %s191 = scalar_select %p190, %s189, 31
      %s192 = smul.addr %s191, 8
      %s193 = scalar_lea.vmem %s0, %s192
      %s194 = smul.u32 16, %s15
      %s195 = smul.u32 16, %s15
      %p196 = scmp.lt.s32.totalorder %s195, 31
      %s197 = scalar_select %p196, %s195, 31
      %s198 = smul.addr %s197, 8
      %s199 = scalar_lea.vmem %s4, %s198
      %s200 = smul.u32 16, %s15
      %v201 = vld [vmem:[%s193] sm:$0xff]
      %v202 = vld [vmem:[%s193 + $0x8] sm:$0xff]
      %v203 = vld [vmem:[%s193 + $0x10] sm:$0xff]
      %v204 = vld [vmem:[%s193 + $0x18] sm:$0xff]
      %v205 = vld [vmem:[%s193 + $0x20] sm:$0xff]
      %v206 = vld [vmem:[%s193 + $0x28] sm:$0xff]
      %v207 = vld [vmem:[%s193 + $0x30] sm:$0xff]
      %v208 = vld [vmem:[%s193 + $0x38] sm:$0xff]
      %v209 = vld [vmem:[%s193 + $0x40] sm:$0xff]
      %v210 = vld [vmem:[%s193 + $0x48] sm:$0xff]
      %v211 = vld [vmem:[%s193 + $0x50] sm:$0xff]
      %v212 = vld [vmem:[%s193 + $0x58] sm:$0xff]
      %v213 = vld [vmem:[%s193 + $0x60] sm:$0xff]
      %v214 = vld [vmem:[%s193 + $0x68] sm:$0xff]
      %v215 = vld [vmem:[%s193 + $0x70] sm:$0xff]
      %v216 = vld [vmem:[%s193 + $0x78] sm:$0xff]
      %v217 = vld [vmem:[%s1] sm:$0xff]
      %v218 = vld [vmem:[%s1 + $0x8] sm:$0xff]
      %v219 = vld [vmem:[%s1 + $0x10] sm:$0xff]
      %v220 = vld [vmem:[%s1 + $0x18] sm:$0xff]
      %v221 = vld [vmem:[%s1 + $0x20] sm:$0xff]
      %v222 = vld [vmem:[%s1 + $0x28] sm:$0xff]
      %v223 = vld [vmem:[%s1 + $0x30] sm:$0xff]
      %v224 = vld [vmem:[%s1 + $0x38] sm:$0xff]
      %v225 = vld [vmem:[%s2] sm:$0xff]
      %v226 = vld [vmem:[%s3] sm:$0xff]
      %v227 = vlaneseq
      %v228 = vand.u32 %v227, 127
      %229 = vset.pattern.permute.xlu0 0
      %230 = vperm.xlu0 %229, %v201
      %v231 = vpop.permute.xlu0 %230
      %232 = vset.pattern.permute.xlu0 0
      %233 = vperm.xlu0 %232, %v202
      %v234 = vpop.permute.xlu0 %233
      %235 = vset.pattern.permute.xlu0 0
      %236 = vperm.xlu0 %235, %v203
      %v237 = vpop.permute.xlu0 %236
      %238 = vset.pattern.permute.xlu0 0
      %239 = vperm.xlu0 %238, %v204
      %v240 = vpop.permute.xlu0 %239
      %241 = vset.pattern.permute.xlu0 0
      %242 = vperm.xlu0 %241, %v205
      %v243 = vpop.permute.xlu0 %242
      %244 = vset.pattern.permute.xlu0 0
      %245 = vperm.xlu0 %244, %v206
      %v246 = vpop.permute.xlu0 %245
      %247 = vset.pattern.permute.xlu0 0
      %248 = vperm.xlu0 %247, %v207
      %v249 = vpop.permute.xlu0 %248
      %250 = vset.pattern.permute.xlu0 0
      %251 = vperm.xlu0 %250, %v208
      %v252 = vpop.permute.xlu0 %251
      %253 = vset.pattern.permute.xlu0 0
      %254 = vperm.xlu0 %253, %v209
      %v255 = vpop.permute.xlu0 %254
      %256 = vset.pattern.permute.xlu0 0
      %257 = vperm.xlu0 %256, %v210
      %v258 = vpop.permute.xlu0 %257
      %259 = vset.pattern.permute.xlu0 0
      %260 = vperm.xlu0 %259, %v211
      %v261 = vpop.permute.xlu0 %260
      %262 = vset.pattern.permute.xlu0 0
      %263 = vperm.xlu0 %262, %v212
      %v264 = vpop.permute.xlu0 %263
      %265 = vset.pattern.permute.xlu0 0
      %266 = vperm.xlu0 %265, %v213
      %v267 = vpop.permute.xlu0 %266
      %268 = vset.pattern.permute.xlu0 0
      %269 = vperm.xlu0 %268, %v214
      %v270 = vpop.permute.xlu0 %269
      %271 = vset.pattern.permute.xlu0 0
      %272 = vperm.xlu0 %271, %v215
      %v273 = vpop.permute.xlu0 %272
      %274 = vset.pattern.permute.xlu0 0
      %275 = vperm.xlu0 %274, %v216
      %v276 = vpop.permute.xlu0 %275
      %vm277 = vcmp.eq.s32.totalorder %v228, %v231
      %vm278 = vcmp.eq.s32.totalorder %v228, %v234
      %vm279 = vcmp.eq.s32.totalorder %v228, %v237
      %vm280 = vcmp.eq.s32.totalorder %v228, %v240
      %vm281 = vcmp.eq.s32.totalorder %v228, %v243
      %vm282 = vcmp.eq.s32.totalorder %v228, %v246
      %vm283 = vcmp.eq.s32.totalorder %v228, %v249
      %vm284 = vcmp.eq.s32.totalorder %v228, %v252
      %vm285 = vcmp.eq.s32.totalorder %v228, %v255
      %vm286 = vcmp.eq.s32.totalorder %v228, %v258
      %vm287 = vcmp.eq.s32.totalorder %v228, %v261
      %vm288 = vcmp.eq.s32.totalorder %v228, %v264
      %vm289 = vcmp.eq.s32.totalorder %v228, %v267
      %vm290 = vcmp.eq.s32.totalorder %v228, %v270
      %vm291 = vcmp.eq.s32.totalorder %v228, %v273
      %vm292 = vcmp.eq.s32.totalorder %v228, %v276
      %v293 = vsel %vm277, 1.0, 0.0
      %v294 = vsel %vm278, 1.0, 0.0
      %v295 = vsel %vm279, 1.0, 0.0
      %v296 = vsel %vm280, 1.0, 0.0
      %v297 = vsel %vm281, 1.0, 0.0
      %v298 = vsel %vm282, 1.0, 0.0
      %v299 = vsel %vm283, 1.0, 0.0
      %v300 = vsel %vm284, 1.0, 0.0
      %v301 = vsel %vm285, 1.0, 0.0
      %v302 = vsel %vm286, 1.0, 0.0
      %v303 = vsel %vm287, 1.0, 0.0
      %v304 = vsel %vm288, 1.0, 0.0
      %v305 = vsel %vm289, 1.0, 0.0
      %v306 = vsel %vm290, 1.0, 0.0
      %v307 = vsel %vm291, 1.0, 0.0
      %v308 = vsel %vm292, 1.0, 0.0
      %vm309 = vcmask 64512
      %v311 = vsel %vm309, %v293, 0
      %v314 = vsel %vm309, %v294, 0
      %v317 = vsel %vm309, %v295, 0
      %v320 = vsel %vm309, %v296, 0
      %v323 = vsel %vm309, %v297, 0
      %v326 = vsel %vm309, %v298, 0
      %v329 = vsel %vm309, %v299, 0
      %v332 = vsel %vm309, %v300, 0
      %v335 = vsel %vm309, %v301, 0
      %v338 = vsel %vm309, %v302, 0
      %v341 = vsel %vm309, %v303, 0
      %v344 = vsel %vm309, %v304, 0
      %v347 = vsel %vm309, %v305, 0
      %v350 = vsel %vm309, %v306, 0
      %v353 = vsel %vm309, %v307, 0
      %v356 = vsel %vm309, %v308, 0
      %358 = vmatprep.subr.mxu0 0.0
      %359 = vmatpush1.msra.mxu0 0.0
      %360 = vmatprep.subr.mxu0 0.0
      %361 = vmatpush1.msra.mxu0 0.0
      %362 = vmatprep.subr.mxu0 0.0
      %363 = vmatpush1.msra.mxu0 0.0
      %364 = vmatprep.subr.mxu0 0.0
      %365 = vmatpush1.msra.mxu0 0.0
      %366 = vmatprep.subr.mxu0 0.0
      %367 = vmatpush1.msra.mxu0 0.0
      %368 = vmatprep.subr.mxu0 0.0
      %369 = vmatpush1.msra.mxu0 0.0
      %370 = vmatprep.subr.mxu0 0.0
      %371 = vmatpush1.msra.mxu0 0.0
      %372 = vmatprep.subr.mxu0 0.0
      %373 = vmatpush1.msra.mxu0 0.0
      %374 = vmatprep.subr.mxu0 0.0
      %375 = vmatpush1.msra.mxu0 0.0
      %376 = vmatprep.subr.mxu0 0.0
      %377 = vmatpush1.msra.mxu0 0.0
      %378 = vmatprep.subr.mxu0 0.0
      %379 = vmatpush1.msra.mxu0 0.0
      %380 = vmatprep.subr.mxu0 0.0
      %381 = vmatpush1.msra.mxu0 0.0
      %382 = vmatprep.subr.mxu0 0.0
      %383 = vmatpush1.msra.mxu0 0.0
      %384 = vmatprep.subr.mxu0 0.0
      %385 = vmatpush1.msra.mxu0 0.0
      %386 = vmatprep.subr.mxu0 0.0
      %387 = vmatpush1.msra.mxu0 0.0
      %388 = vmatprep.subr.mxu0 0.0
      %389 = vmatpush1.msra.mxu0 %v225
      %390 = vmatprep.subr.mxu0 0.0
      %391 = vmatpush2.msra.mxu0 0.0
      %392 = vmatprep.subr.mxu0 0.0
      %393 = vmatpush2.msra.mxu0 0.0
      %394 = vmatprep.subr.mxu0 0.0
      %395 = vmatpush2.msra.mxu0 0.0
      %396 = vmatprep.subr.mxu0 0.0
      %397 = vmatpush2.msra.mxu0 0.0
      %398 = vmatprep.subr.mxu0 0.0
      %399 = vmatpush2.msra.mxu0 0.0
      %400 = vmatprep.subr.mxu0 0.0
      %401 = vmatpush2.msra.mxu0 0.0
      %402 = vmatprep.subr.mxu0 0.0
      %403 = vmatpush2.msra.mxu0 0.0
      %404 = vmatprep.subr.mxu0 0.0
      %405 = vmatpush2.msra.mxu0 0.0
      %406 = vmatprep.subr.mxu0 0.0
      %407 = vmatpush2.msra.mxu0 0.0
      %408 = vmatprep.subr.mxu0 0.0
      %409 = vmatpush2.msra.mxu0 0.0
      %410 = vmatprep.subr.mxu0 0.0
      %411 = vmatpush2.msra.mxu0 0.0
      %412 = vmatprep.subr.mxu0 0.0
      %413 = vmatpush2.msra.mxu0 0.0
      %414 = vmatprep.subr.mxu0 0.0
      %415 = vmatpush2.msra.mxu0 0.0
      %416 = vmatprep.subr.mxu0 0.0
      %417 = vmatpush2.msra.mxu0 0.0
      %418 = vmatprep.subr.mxu0 0.0
      %419 = vmatpush2.msra.mxu0 0.0
      %420 = vmatprep.subr.mxu0 0.0
      %421 = vmatpush2.msra.mxu0 0.0
      %422 = vmatprep.mubr.f32.mxu0 0.0
      %423 = vmatmul.mubr.f32.gmra.mxu0 %v311
      %v424 = vpop.f32.mrf.mxu0
      %v425 = vadd.f32 0.0, %v424
      %v426 = vpop.f32.mrf.mxu0
      %427 = vmatprep.mubr.f32.mxu0 0.0
      %428 = vmatmul.mubr.f32.gmra.mxu0 %v314
      %v429 = vpop.f32.mrf.mxu0
      %v430 = vadd.f32 0.0, %v429
      %v431 = vpop.f32.mrf.mxu0
      %432 = vmatprep.mubr.f32.mxu0 0.0
      %433 = vmatmul.mubr.f32.gmra.mxu0 %v317
      %v434 = vpop.f32.mrf.mxu0
      %v435 = vadd.f32 0.0, %v434
      %v436 = vpop.f32.mrf.mxu0
      %437 = vmatprep.mubr.f32.mxu0 0.0
      %438 = vmatmul.mubr.f32.gmra.mxu0 %v320
      %v439 = vpop.f32.mrf.mxu0
      %v440 = vadd.f32 0.0, %v439
      %v441 = vpop.f32.mrf.mxu0
      %442 = vmatprep.mubr.f32.mxu0 0.0
      %443 = vmatmul.mubr.f32.gmra.mxu0 %v323
      %v444 = vpop.f32.mrf.mxu0
      %v445 = vadd.f32 0.0, %v444
      %v446 = vpop.f32.mrf.mxu0
      %447 = vmatprep.mubr.f32.mxu0 0.0
      %448 = vmatmul.mubr.f32.gmra.mxu0 %v326
      %v449 = vpop.f32.mrf.mxu0
      %v450 = vadd.f32 0.0, %v449
      %v451 = vpop.f32.mrf.mxu0
      %452 = vmatprep.mubr.f32.mxu0 0.0
      %453 = vmatmul.mubr.f32.gmra.mxu0 %v329
      %v454 = vpop.f32.mrf.mxu0
      %v455 = vadd.f32 0.0, %v454
      %v456 = vpop.f32.mrf.mxu0
      %457 = vmatprep.mubr.f32.mxu0 0.0
      %458 = vmatmul.mubr.f32.gmra.mxu0 %v332
      %v459 = vpop.f32.mrf.mxu0
      %v460 = vadd.f32 0.0, %v459
      %v461 = vpop.f32.mrf.mxu0
      %462 = vmatprep.mubr.f32.mxu0 0.0
      %463 = vmatmul.mubr.f32.gmra.mxu0 %v335
      %v464 = vpop.f32.mrf.mxu0
      %v465 = vadd.f32 0.0, %v464
      %v466 = vpop.f32.mrf.mxu0
      %467 = vmatprep.mubr.f32.mxu0 0.0
      %468 = vmatmul.mubr.f32.gmra.mxu0 %v338
      %v469 = vpop.f32.mrf.mxu0
      %v470 = vadd.f32 0.0, %v469
      %v471 = vpop.f32.mrf.mxu0
      %472 = vmatprep.mubr.f32.mxu0 0.0
      %473 = vmatmul.mubr.f32.gmra.mxu0 %v341
      %v474 = vpop.f32.mrf.mxu0
      %v475 = vadd.f32 0.0, %v474
      %v476 = vpop.f32.mrf.mxu0
      %477 = vmatprep.mubr.f32.mxu0 0.0
      %478 = vmatmul.mubr.f32.gmra.mxu0 %v344
      %v479 = vpop.f32.mrf.mxu0
      %v480 = vadd.f32 0.0, %v479
      %v481 = vpop.f32.mrf.mxu0
      %482 = vmatprep.mubr.f32.mxu0 0.0
      %483 = vmatmul.mubr.f32.gmra.mxu0 %v347
      %v484 = vpop.f32.mrf.mxu0
      %v485 = vadd.f32 0.0, %v484
      %v486 = vpop.f32.mrf.mxu0
      %487 = vmatprep.mubr.f32.mxu0 0.0
      %488 = vmatmul.mubr.f32.gmra.mxu0 %v350
      %v489 = vpop.f32.mrf.mxu0
      %v490 = vadd.f32 0.0, %v489
      %v491 = vpop.f32.mrf.mxu0
      %492 = vmatprep.mubr.f32.mxu0 0.0
      %493 = vmatmul.mubr.f32.gmra.mxu0 %v353
      %v494 = vpop.f32.mrf.mxu0
      %v495 = vadd.f32 0.0, %v494
      %v496 = vpop.f32.mrf.mxu0
      %497 = vmatprep.mubr.f32.mxu0 0.0
      %498 = vmatmul.mubr.f32.gmra.mxu0 %v356
      %v499 = vpop.f32.mrf.mxu0
      %v500 = vadd.f32 0.0, %v499
      %v501 = vpop.f32.mrf.mxu0
      %502 = vdwg.mxu0
      %503 = vmatprep.subr.mxu0 0.0
      %504 = vmatpush1.msra.mxu0 0.0
      %505 = vmatprep.subr.mxu0 0.0
      %506 = vmatpush1.msra.mxu0 0.0
      %507 = vmatprep.subr.mxu0 0.0
      %508 = vmatpush1.msra.mxu0 0.0
      %509 = vmatprep.subr.mxu0 0.0
      %510 = vmatpush1.msra.mxu0 0.0
      %511 = vmatprep.subr.mxu0 0.0
      %512 = vmatpush1.msra.mxu0 0.0
      %513 = vmatprep.subr.mxu0 0.0
      %514 = vmatpush1.msra.mxu0 0.0
      %515 = vmatprep.subr.mxu0 0.0
      %516 = vmatpush1.msra.mxu0 0.0
      %517 = vmatprep.subr.mxu0 0.0
      %518 = vmatpush1.msra.mxu0 0.0
      %519 = vmatprep.subr.mxu0 0.0
      %520 = vmatpush1.msra.mxu0 0.0
      %521 = vmatprep.subr.mxu0 0.0
      %522 = vmatpush1.msra.mxu0 0.0
      %523 = vmatprep.subr.mxu0 0.0
      %524 = vmatpush1.msra.mxu0 0.0
      %525 = vmatprep.subr.mxu0 0.0
      %526 = vmatpush1.msra.mxu0 0.0
      %527 = vmatprep.subr.mxu0 0.0
      %528 = vmatpush1.msra.mxu0 0.0
      %529 = vmatprep.subr.mxu0 0.0
      %530 = vmatpush1.msra.mxu0 0.0
      %531 = vmatprep.subr.mxu0 0.0
      %532 = vmatpush1.msra.mxu0 0.0
      %533 = vmatprep.subr.mxu0 0.0
      %534 = vmatpush1.msra.mxu0 %v226
      %535 = vmatprep.subr.mxu0 0.0
      %536 = vmatpush2.msra.mxu0 0.0
      %537 = vmatprep.subr.mxu0 0.0
      %538 = vmatpush2.msra.mxu0 0.0
      %539 = vmatprep.subr.mxu0 0.0
      %540 = vmatpush2.msra.mxu0 0.0
      %541 = vmatprep.subr.mxu0 0.0
      %542 = vmatpush2.msra.mxu0 0.0
      %543 = vmatprep.subr.mxu0 0.0
      %544 = vmatpush2.msra.mxu0 0.0
      %545 = vmatprep.subr.mxu0 0.0
      %546 = vmatpush2.msra.mxu0 0.0
      %547 = vmatprep.subr.mxu0 0.0
      %548 = vmatpush2.msra.mxu0 0.0
      %549 = vmatprep.subr.mxu0 0.0
      %550 = vmatpush2.msra.mxu0 0.0
      %551 = vmatprep.subr.mxu0 0.0
      %552 = vmatpush2.msra.mxu0 0.0
      %553 = vmatprep.subr.mxu0 0.0
      %554 = vmatpush2.msra.mxu0 0.0
      %555 = vmatprep.subr.mxu0 0.0
      %556 = vmatpush2.msra.mxu0 0.0
      %557 = vmatprep.subr.mxu0 0.0
      %558 = vmatpush2.msra.mxu0 0.0
      %559 = vmatprep.subr.mxu0 0.0
      %560 = vmatpush2.msra.mxu0 0.0
      %561 = vmatprep.subr.mxu0 0.0
      %562 = vmatpush2.msra.mxu0 0.0
      %563 = vmatprep.subr.mxu0 0.0
      %564 = vmatpush2.msra.mxu0 0.0
      %565 = vmatprep.subr.mxu0 0.0
      %566 = vmatpush2.msra.mxu0 0.0
      %567 = vmatprep.mubr.f32.mxu0 0.0
      %568 = vmatmul.mubr.f32.gmra.mxu0 %v311
      %v569 = vpop.f32.mrf.mxu0
      %v570 = vadd.f32 0.0, %v569
      %v571 = vpop.f32.mrf.mxu0
      %572 = vmatprep.mubr.f32.mxu0 0.0
      %573 = vmatmul.mubr.f32.gmra.mxu0 %v314
      %v574 = vpop.f32.mrf.mxu0
      %v575 = vadd.f32 0.0, %v574
      %v576 = vpop.f32.mrf.mxu0
      %577 = vmatprep.mubr.f32.mxu0 0.0
      %578 = vmatmul.mubr.f32.gmra.mxu0 %v317
      %v579 = vpop.f32.mrf.mxu0
      %v580 = vadd.f32 0.0, %v579
      %v581 = vpop.f32.mrf.mxu0
      %582 = vmatprep.mubr.f32.mxu0 0.0
      %583 = vmatmul.mubr.f32.gmra.mxu0 %v320
      %v584 = vpop.f32.mrf.mxu0
      %v585 = vadd.f32 0.0, %v584
      %v586 = vpop.f32.mrf.mxu0
      %587 = vmatprep.mubr.f32.mxu0 0.0
      %588 = vmatmul.mubr.f32.gmra.mxu0 %v323
      %v589 = vpop.f32.mrf.mxu0
      %v590 = vadd.f32 0.0, %v589
      %v591 = vpop.f32.mrf.mxu0
      %592 = vmatprep.mubr.f32.mxu0 0.0
      %593 = vmatmul.mubr.f32.gmra.mxu0 %v326
      %v594 = vpop.f32.mrf.mxu0
      %v595 = vadd.f32 0.0, %v594
      %v596 = vpop.f32.mrf.mxu0
      %597 = vmatprep.mubr.f32.mxu0 0.0
      %598 = vmatmul.mubr.f32.gmra.mxu0 %v329
      %v599 = vpop.f32.mrf.mxu0
      %v600 = vadd.f32 0.0, %v599
      %v601 = vpop.f32.mrf.mxu0
      %602 = vmatprep.mubr.f32.mxu0 0.0
      %603 = vmatmul.mubr.f32.gmra.mxu0 %v332
      %v604 = vpop.f32.mrf.mxu0
      %v605 = vadd.f32 0.0, %v604
      %v606 = vpop.f32.mrf.mxu0
      %607 = vmatprep.mubr.f32.mxu0 0.0
      %608 = vmatmul.mubr.f32.gmra.mxu0 %v335
      %v609 = vpop.f32.mrf.mxu0
      %v610 = vadd.f32 0.0, %v609
      %v611 = vpop.f32.mrf.mxu0
      %612 = vmatprep.mubr.f32.mxu0 0.0
      %613 = vmatmul.mubr.f32.gmra.mxu0 %v338
      %v614 = vpop.f32.mrf.mxu0
      %v615 = vadd.f32 0.0, %v614
      %v616 = vpop.f32.mrf.mxu0
      %617 = vmatprep.mubr.f32.mxu0 0.0
      %618 = vmatmul.mubr.f32.gmra.mxu0 %v341
      %v619 = vpop.f32.mrf.mxu0
      %v620 = vadd.f32 0.0, %v619
      %v621 = vpop.f32.mrf.mxu0
      %622 = vmatprep.mubr.f32.mxu0 0.0
      %623 = vmatmul.mubr.f32.gmra.mxu0 %v344
      %v624 = vpop.f32.mrf.mxu0
      %v625 = vadd.f32 0.0, %v624
      %v626 = vpop.f32.mrf.mxu0
      %627 = vmatprep.mubr.f32.mxu0 0.0
      %628 = vmatmul.mubr.f32.gmra.mxu0 %v347
      %v629 = vpop.f32.mrf.mxu0
      %v630 = vadd.f32 0.0, %v629
      %v631 = vpop.f32.mrf.mxu0
      %632 = vmatprep.mubr.f32.mxu0 0.0
      %633 = vmatmul.mubr.f32.gmra.mxu0 %v350
      %v634 = vpop.f32.mrf.mxu0
      %v635 = vadd.f32 0.0, %v634
      %v636 = vpop.f32.mrf.mxu0
      %637 = vmatprep.mubr.f32.mxu0 0.0
      %638 = vmatmul.mubr.f32.gmra.mxu0 %v353
      %v639 = vpop.f32.mrf.mxu0
      %v640 = vadd.f32 0.0, %v639
      %v641 = vpop.f32.mrf.mxu0
      %642 = vmatprep.mubr.f32.mxu0 0.0
      %643 = vmatmul.mubr.f32.gmra.mxu0 %v356
      %v644 = vpop.f32.mrf.mxu0
      %v645 = vadd.f32 0.0, %v644
      %v646 = vpop.f32.mrf.mxu0
      %647 = vdwg.mxu0
      %648 = vset.pattern.permute.xlu0 1
      %649 = vperm.xlu0 %648, %v201
      %v650 = vpop.permute.xlu0 %649
      %651 = vset.pattern.permute.xlu0 1
      %652 = vperm.xlu0 %651, %v202
      %v653 = vpop.permute.xlu0 %652
      %654 = vset.pattern.permute.xlu0 1
      %655 = vperm.xlu0 %654, %v203
      %v656 = vpop.permute.xlu0 %655
      %657 = vset.pattern.permute.xlu0 1
      %658 = vperm.xlu0 %657, %v204
      %v659 = vpop.permute.xlu0 %658
      %660 = vset.pattern.permute.xlu0 1
      %661 = vperm.xlu0 %660, %v205
      %v662 = vpop.permute.xlu0 %661
      %663 = vset.pattern.permute.xlu0 1
      %664 = vperm.xlu0 %663, %v206
      %v665 = vpop.permute.xlu0 %664
      %666 = vset.pattern.permute.xlu0 1
      %667 = vperm.xlu0 %666, %v207
      %v668 = vpop.permute.xlu0 %667
      %669 = vset.pattern.permute.xlu0 1
      %670 = vperm.xlu0 %669, %v208
      %v671 = vpop.permute.xlu0 %670
      %672 = vset.pattern.permute.xlu0 1
      %673 = vperm.xlu0 %672, %v209
      %v674 = vpop.permute.xlu0 %673
      %675 = vset.pattern.permute.xlu0 1
      %676 = vperm.xlu0 %675, %v210
      %v677 = vpop.permute.xlu0 %676
      %678 = vset.pattern.permute.xlu0 1
      %679 = vperm.xlu0 %678, %v211
      %v680 = vpop.permute.xlu0 %679
      %681 = vset.pattern.permute.xlu0 1
      %682 = vperm.xlu0 %681, %v212
      %v683 = vpop.permute.xlu0 %682
      %684 = vset.pattern.permute.xlu0 1
      %685 = vperm.xlu0 %684, %v213
      %v686 = vpop.permute.xlu0 %685
      %687 = vset.pattern.permute.xlu0 1
      %688 = vperm.xlu0 %687, %v214
      %v689 = vpop.permute.xlu0 %688
      %690 = vset.pattern.permute.xlu0 1
      %691 = vperm.xlu0 %690, %v215
      %v692 = vpop.permute.xlu0 %691
      %693 = vset.pattern.permute.xlu0 1
      %694 = vperm.xlu0 %693, %v216
      %v695 = vpop.permute.xlu0 %694
      %vm696 = vcmp.eq.s32.totalorder %v228, %v650
      %vm697 = vcmp.eq.s32.totalorder %v228, %v653
      %vm698 = vcmp.eq.s32.totalorder %v228, %v656
      %vm699 = vcmp.eq.s32.totalorder %v228, %v659
      %vm700 = vcmp.eq.s32.totalorder %v228, %v662
      %vm701 = vcmp.eq.s32.totalorder %v228, %v665
      %vm702 = vcmp.eq.s32.totalorder %v228, %v668
      %vm703 = vcmp.eq.s32.totalorder %v228, %v671
      %vm704 = vcmp.eq.s32.totalorder %v228, %v674
      %vm705 = vcmp.eq.s32.totalorder %v228, %v677
      %vm706 = vcmp.eq.s32.totalorder %v228, %v680
      %vm707 = vcmp.eq.s32.totalorder %v228, %v683
      %vm708 = vcmp.eq.s32.totalorder %v228, %v686
      %vm709 = vcmp.eq.s32.totalorder %v228, %v689
      %vm710 = vcmp.eq.s32.totalorder %v228, %v692
      %vm711 = vcmp.eq.s32.totalorder %v228, %v695
      %v712 = vsel %vm696, 1.0, 0.0
      %v713 = vsel %vm697, 1.0, 0.0
      %v714 = vsel %vm698, 1.0, 0.0
      %v715 = vsel %vm699, 1.0, 0.0
      %v716 = vsel %vm700, 1.0, 0.0
      %v717 = vsel %vm701, 1.0, 0.0
      %v718 = vsel %vm702, 1.0, 0.0
      %v719 = vsel %vm703, 1.0, 0.0
      %v720 = vsel %vm704, 1.0, 0.0
      %v721 = vsel %vm705, 1.0, 0.0
      %v722 = vsel %vm706, 1.0, 0.0
      %v723 = vsel %vm707, 1.0, 0.0
      %v724 = vsel %vm708, 1.0, 0.0
      %v725 = vsel %vm709, 1.0, 0.0
      %v726 = vsel %vm710, 1.0, 0.0
      %v727 = vsel %vm711, 1.0, 0.0
      %vm728 = vcmask 523264
      %v730 = vsel %vm728, %v712, 0
      %v733 = vsel %vm728, %v713, 0
      %v736 = vsel %vm728, %v714, 0
      %v739 = vsel %vm728, %v715, 0
      %v742 = vsel %vm728, %v716, 0
      %v745 = vsel %vm728, %v717, 0
      %v748 = vsel %vm728, %v718, 0
      %v751 = vsel %vm728, %v719, 0
      %v754 = vsel %vm728, %v720, 0
      %v757 = vsel %vm728, %v721, 0
      %v760 = vsel %vm728, %v722, 0
      %v763 = vsel %vm728, %v723, 0
      %v766 = vsel %vm728, %v724, 0
      %v769 = vsel %vm728, %v725, 0
      %v772 = vsel %vm728, %v726, 0
      %v775 = vsel %vm728, %v727, 0
      %777 = vmatprep.subr.mxu0 0.0
      %778 = vmatpush1.msra.mxu0 0.0
      %779 = vmatprep.subr.mxu0 0.0
      %780 = vmatpush1.msra.mxu0 0.0
      %781 = vmatprep.subr.mxu0 0.0
      %782 = vmatpush1.msra.mxu0 0.0
      %783 = vmatprep.subr.mxu0 0.0
      %784 = vmatpush1.msra.mxu0 0.0
      %785 = vmatprep.subr.mxu0 0.0
      %786 = vmatpush1.msra.mxu0 0.0
      %787 = vmatprep.subr.mxu0 0.0
      %788 = vmatpush1.msra.mxu0 0.0
      %789 = vmatprep.subr.mxu0 0.0
      %790 = vmatpush1.msra.mxu0 0.0
      %791 = vmatprep.subr.mxu0 0.0
      %792 = vmatpush1.msra.mxu0 0.0
      %793 = vmatprep.subr.mxu0 0.0
      %794 = vmatpush1.msra.mxu0 %v224
      %795 = vmatprep.subr.mxu0 0.0
      %796 = vmatpush1.msra.mxu0 %v223
      %797 = vmatprep.subr.mxu0 0.0
      %798 = vmatpush1.msra.mxu0 %v222
      %799 = vmatprep.subr.mxu0 0.0
      %800 = vmatpush1.msra.mxu0 %v221
      %801 = vmatprep.subr.mxu0 0.0
      %802 = vmatpush1.msra.mxu0 %v220
      %803 = vmatprep.subr.mxu0 0.0
      %804 = vmatpush1.msra.mxu0 %v219
      %805 = vmatprep.subr.mxu0 0.0
      %806 = vmatpush1.msra.mxu0 %v218
      %807 = vmatprep.subr.mxu0 0.0
      %808 = vmatpush1.msra.mxu0 %v217
      %809 = vmatprep.subr.mxu0 0.0
      %810 = vmatpush2.msra.mxu0 0.0
      %811 = vmatprep.subr.mxu0 0.0
      %812 = vmatpush2.msra.mxu0 0.0
      %813 = vmatprep.subr.mxu0 0.0
      %814 = vmatpush2.msra.mxu0 0.0
      %815 = vmatprep.subr.mxu0 0.0
      %816 = vmatpush2.msra.mxu0 0.0
      %817 = vmatprep.subr.mxu0 0.0
      %818 = vmatpush2.msra.mxu0 0.0
      %819 = vmatprep.subr.mxu0 0.0
      %820 = vmatpush2.msra.mxu0 0.0
      %821 = vmatprep.subr.mxu0 0.0
      %822 = vmatpush2.msra.mxu0 0.0
      %823 = vmatprep.subr.mxu0 0.0
      %824 = vmatpush2.msra.mxu0 0.0
      %825 = vmatprep.subr.mxu0 0.0
      %826 = vmatpush2.msra.mxu0 0.0
      %827 = vmatprep.subr.mxu0 0.0
      %828 = vmatpush2.msra.mxu0 0.0
      %829 = vmatprep.subr.mxu0 0.0
      %830 = vmatpush2.msra.mxu0 0.0
      %831 = vmatprep.subr.mxu0 0.0
      %832 = vmatpush2.msra.mxu0 0.0
      %833 = vmatprep.subr.mxu0 0.0
      %834 = vmatpush2.msra.mxu0 0.0
      %835 = vmatprep.subr.mxu0 0.0
      %836 = vmatpush2.msra.mxu0 0.0
      %837 = vmatprep.subr.mxu0 0.0
      %838 = vmatpush2.msra.mxu0 0.0
      %839 = vmatprep.subr.mxu0 0.0
      %840 = vmatpush2.msra.mxu0 0.0
      %841 = vmatprep.mubr.f32.mxu0 0.0
      %842 = vmatmul.mubr.f32.gmra.mxu0 %v730
      %v843 = vpop.f32.mrf.mxu0
      %v844 = vadd.f32 0.0, %v843
      %v845 = vpop.f32.mrf.mxu0
      %846 = vmatprep.mubr.f32.mxu0 0.0
      %847 = vmatmul.mubr.f32.gmra.mxu0 %v733
      %v848 = vpop.f32.mrf.mxu0
      %v849 = vadd.f32 0.0, %v848
      %v850 = vpop.f32.mrf.mxu0
      %851 = vmatprep.mubr.f32.mxu0 0.0
      %852 = vmatmul.mubr.f32.gmra.mxu0 %v736
      %v853 = vpop.f32.mrf.mxu0
      %v854 = vadd.f32 0.0, %v853
      %v855 = vpop.f32.mrf.mxu0
      %856 = vmatprep.mubr.f32.mxu0 0.0
      %857 = vmatmul.mubr.f32.gmra.mxu0 %v739
      %v858 = vpop.f32.mrf.mxu0
      %v859 = vadd.f32 0.0, %v858
      %v860 = vpop.f32.mrf.mxu0
      %861 = vmatprep.mubr.f32.mxu0 0.0
      %862 = vmatmul.mubr.f32.gmra.mxu0 %v742
      %v863 = vpop.f32.mrf.mxu0
      %v864 = vadd.f32 0.0, %v863
      %v865 = vpop.f32.mrf.mxu0
      %866 = vmatprep.mubr.f32.mxu0 0.0
      %867 = vmatmul.mubr.f32.gmra.mxu0 %v745
      %v868 = vpop.f32.mrf.mxu0
      %v869 = vadd.f32 0.0, %v868
      %v870 = vpop.f32.mrf.mxu0
      %871 = vmatprep.mubr.f32.mxu0 0.0
      %872 = vmatmul.mubr.f32.gmra.mxu0 %v748
      %v873 = vpop.f32.mrf.mxu0
      %v874 = vadd.f32 0.0, %v873
      %v875 = vpop.f32.mrf.mxu0
      %876 = vmatprep.mubr.f32.mxu0 0.0
      %877 = vmatmul.mubr.f32.gmra.mxu0 %v751
      %v878 = vpop.f32.mrf.mxu0
      %v879 = vadd.f32 0.0, %v878
      %v880 = vpop.f32.mrf.mxu0
      %881 = vmatprep.mubr.f32.mxu0 0.0
      %882 = vmatmul.mubr.f32.gmra.mxu0 %v754
      %v883 = vpop.f32.mrf.mxu0
      %v884 = vadd.f32 0.0, %v883
      %v885 = vpop.f32.mrf.mxu0
      %886 = vmatprep.mubr.f32.mxu0 0.0
      %887 = vmatmul.mubr.f32.gmra.mxu0 %v757
      %v888 = vpop.f32.mrf.mxu0
      %v889 = vadd.f32 0.0, %v888
      %v890 = vpop.f32.mrf.mxu0
      %891 = vmatprep.mubr.f32.mxu0 0.0
      %892 = vmatmul.mubr.f32.gmra.mxu0 %v760
      %v893 = vpop.f32.mrf.mxu0
      %v894 = vadd.f32 0.0, %v893
      %v895 = vpop.f32.mrf.mxu0
      %896 = vmatprep.mubr.f32.mxu0 0.0
      %897 = vmatmul.mubr.f32.gmra.mxu0 %v763
      %v898 = vpop.f32.mrf.mxu0
      %v899 = vadd.f32 0.0, %v898
      %v900 = vpop.f32.mrf.mxu0
      %901 = vmatprep.mubr.f32.mxu0 0.0
      %902 = vmatmul.mubr.f32.gmra.mxu0 %v766
      %v903 = vpop.f32.mrf.mxu0
      %v904 = vadd.f32 0.0, %v903
      %v905 = vpop.f32.mrf.mxu0
      %906 = vmatprep.mubr.f32.mxu0 0.0
      %907 = vmatmul.mubr.f32.gmra.mxu0 %v769
      %v908 = vpop.f32.mrf.mxu0
      %v909 = vadd.f32 0.0, %v908
      %v910 = vpop.f32.mrf.mxu0
      %911 = vmatprep.mubr.f32.mxu0 0.0
      %912 = vmatmul.mubr.f32.gmra.mxu0 %v772
      %v913 = vpop.f32.mrf.mxu0
      %v914 = vadd.f32 0.0, %v913
      %v915 = vpop.f32.mrf.mxu0
      %916 = vmatprep.mubr.f32.mxu0 0.0
      %917 = vmatmul.mubr.f32.gmra.mxu0 %v775
      %v918 = vpop.f32.mrf.mxu0
      %v919 = vadd.f32 0.0, %v918
      %v920 = vpop.f32.mrf.mxu0
      %921 = vdwg.mxu0
      %922 = vset.pattern.permute.xlu0 2
      %923 = vperm.xlu0 %922, %v201
      %v924 = vpop.permute.xlu0 %923
      %925 = vset.pattern.permute.xlu0 2
      %926 = vperm.xlu0 %925, %v202
      %v927 = vpop.permute.xlu0 %926
      %928 = vset.pattern.permute.xlu0 2
      %929 = vperm.xlu0 %928, %v203
      %v930 = vpop.permute.xlu0 %929
      %931 = vset.pattern.permute.xlu0 2
      %932 = vperm.xlu0 %931, %v204
      %v933 = vpop.permute.xlu0 %932
      %934 = vset.pattern.permute.xlu0 2
      %935 = vperm.xlu0 %934, %v205
      %v936 = vpop.permute.xlu0 %935
      %937 = vset.pattern.permute.xlu0 2
      %938 = vperm.xlu0 %937, %v206
      %v939 = vpop.permute.xlu0 %938
      %940 = vset.pattern.permute.xlu0 2
      %941 = vperm.xlu0 %940, %v207
      %v942 = vpop.permute.xlu0 %941
      %943 = vset.pattern.permute.xlu0 2
      %944 = vperm.xlu0 %943, %v208
      %v945 = vpop.permute.xlu0 %944
      %946 = vset.pattern.permute.xlu0 2
      %947 = vperm.xlu0 %946, %v209
      %v948 = vpop.permute.xlu0 %947
      %949 = vset.pattern.permute.xlu0 2
      %950 = vperm.xlu0 %949, %v210
      %v951 = vpop.permute.xlu0 %950
      %952 = vset.pattern.permute.xlu0 2
      %953 = vperm.xlu0 %952, %v211
      %v954 = vpop.permute.xlu0 %953
      %955 = vset.pattern.permute.xlu0 2
      %956 = vperm.xlu0 %955, %v212
      %v957 = vpop.permute.xlu0 %956
      %958 = vset.pattern.permute.xlu0 2
      %959 = vperm.xlu0 %958, %v213
      %v960 = vpop.permute.xlu0 %959
      %961 = vset.pattern.permute.xlu0 2
      %962 = vperm.xlu0 %961, %v214
      %v963 = vpop.permute.xlu0 %962
      %964 = vset.pattern.permute.xlu0 2
      %965 = vperm.xlu0 %964, %v215
      %v966 = vpop.permute.xlu0 %965
      %967 = vset.pattern.permute.xlu0 2
      %968 = vperm.xlu0 %967, %v216
      %v969 = vpop.permute.xlu0 %968
      %vm970 = vcmp.eq.s32.totalorder %v228, %v924
      %vm971 = vcmp.eq.s32.totalorder %v228, %v927
      %vm972 = vcmp.eq.s32.totalorder %v228, %v930
      %vm973 = vcmp.eq.s32.totalorder %v228, %v933
      %vm974 = vcmp.eq.s32.totalorder %v228, %v936
      %vm975 = vcmp.eq.s32.totalorder %v228, %v939
      %vm976 = vcmp.eq.s32.totalorder %v228, %v942
      %vm977 = vcmp.eq.s32.totalorder %v228, %v945
      %vm978 = vcmp.eq.s32.totalorder %v228, %v948
      %vm979 = vcmp.eq.s32.totalorder %v228, %v951
      %vm980 = vcmp.eq.s32.totalorder %v228, %v954
      %vm981 = vcmp.eq.s32.totalorder %v228, %v957
      %vm982 = vcmp.eq.s32.totalorder %v228, %v960
      %vm983 = vcmp.eq.s32.totalorder %v228, %v963
      %vm984 = vcmp.eq.s32.totalorder %v228, %v966
      %vm985 = vcmp.eq.s32.totalorder %v228, %v969
      %v986 = vsel %vm970, 1.0, 0.0
      %v987 = vsel %vm971, 1.0, 0.0
      %v988 = vsel %vm972, 1.0, 0.0
      %v989 = vsel %vm973, 1.0, 0.0
      %v990 = vsel %vm974, 1.0, 0.0
      %v991 = vsel %vm975, 1.0, 0.0
      %v992 = vsel %vm976, 1.0, 0.0
      %v993 = vsel %vm977, 1.0, 0.0
      %v994 = vsel %vm978, 1.0, 0.0
      %v995 = vsel %vm979, 1.0, 0.0
      %v996 = vsel %vm980, 1.0, 0.0
      %v997 = vsel %vm981, 1.0, 0.0
      %v998 = vsel %vm982, 1.0, 0.0
      %v999 = vsel %vm983, 1.0, 0.0
      %v1000 = vsel %vm984, 1.0, 0.0
      %v1001 = vsel %vm985, 1.0, 0.0
      %v1003 = vsel %vm728, %v986, 0
      %v1006 = vsel %vm728, %v987, 0
      %v1009 = vsel %vm728, %v988, 0
      %v1012 = vsel %vm728, %v989, 0
      %v1015 = vsel %vm728, %v990, 0
      %v1018 = vsel %vm728, %v991, 0
      %v1021 = vsel %vm728, %v992, 0
      %v1024 = vsel %vm728, %v993, 0
      %v1027 = vsel %vm728, %v994, 0
      %v1030 = vsel %vm728, %v995, 0
      %v1033 = vsel %vm728, %v996, 0
      %v1036 = vsel %vm728, %v997, 0
      %v1039 = vsel %vm728, %v998, 0
      %v1042 = vsel %vm728, %v999, 0
      %v1045 = vsel %vm728, %v1000, 0
      %v1048 = vsel %vm728, %v1001, 0
      %1050 = vmatprep.subr.mxu0 0.0
      %1051 = vmatpush1.msra.mxu0 0.0
      %1052 = vmatprep.subr.mxu0 0.0
      %1053 = vmatpush1.msra.mxu0 0.0
      %1054 = vmatprep.subr.mxu0 0.0
      %1055 = vmatpush1.msra.mxu0 0.0
      %1056 = vmatprep.subr.mxu0 0.0
      %1057 = vmatpush1.msra.mxu0 0.0
      %1058 = vmatprep.subr.mxu0 0.0
      %1059 = vmatpush1.msra.mxu0 0.0
      %1060 = vmatprep.subr.mxu0 0.0
      %1061 = vmatpush1.msra.mxu0 0.0
      %1062 = vmatprep.subr.mxu0 0.0
      %1063 = vmatpush1.msra.mxu0 0.0
      %1064 = vmatprep.subr.mxu0 0.0
      %1065 = vmatpush1.msra.mxu0 0.0
      %1066 = vmatprep.subr.mxu0 0.0
      %1067 = vmatpush1.msra.mxu0 %v224
      %1068 = vmatprep.subr.mxu0 0.0
      %1069 = vmatpush1.msra.mxu0 %v223
      %1070 = vmatprep.subr.mxu0 0.0
      %1071 = vmatpush1.msra.mxu0 %v222
      %1072 = vmatprep.subr.mxu0 0.0
      %1073 = vmatpush1.msra.mxu0 %v221
      %1074 = vmatprep.subr.mxu0 0.0
      %1075 = vmatpush1.msra.mxu0 %v220
      %1076 = vmatprep.subr.mxu0 0.0
      %1077 = vmatpush1.msra.mxu0 %v219
      %1078 = vmatprep.subr.mxu0 0.0
      %1079 = vmatpush1.msra.mxu0 %v218
      %1080 = vmatprep.subr.mxu0 0.0
      %1081 = vmatpush1.msra.mxu0 %v217
      %1082 = vmatprep.subr.mxu0 0.0
      %1083 = vmatpush2.msra.mxu0 0.0
      %1084 = vmatprep.subr.mxu0 0.0
      %1085 = vmatpush2.msra.mxu0 0.0
      %1086 = vmatprep.subr.mxu0 0.0
      %1087 = vmatpush2.msra.mxu0 0.0
      %1088 = vmatprep.subr.mxu0 0.0
      %1089 = vmatpush2.msra.mxu0 0.0
      %1090 = vmatprep.subr.mxu0 0.0
      %1091 = vmatpush2.msra.mxu0 0.0
      %1092 = vmatprep.subr.mxu0 0.0
      %1093 = vmatpush2.msra.mxu0 0.0
      %1094 = vmatprep.subr.mxu0 0.0
      %1095 = vmatpush2.msra.mxu0 0.0
      %1096 = vmatprep.subr.mxu0 0.0
      %1097 = vmatpush2.msra.mxu0 0.0
      %1098 = vmatprep.subr.mxu0 0.0
      %1099 = vmatpush2.msra.mxu0 0.0
      %1100 = vmatprep.subr.mxu0 0.0
      %1101 = vmatpush2.msra.mxu0 0.0
      %1102 = vmatprep.subr.mxu0 0.0
      %1103 = vmatpush2.msra.mxu0 0.0
      %1104 = vmatprep.subr.mxu0 0.0
      %1105 = vmatpush2.msra.mxu0 0.0
      %1106 = vmatprep.subr.mxu0 0.0
      %1107 = vmatpush2.msra.mxu0 0.0
      %1108 = vmatprep.subr.mxu0 0.0
      %1109 = vmatpush2.msra.mxu0 0.0
      %1110 = vmatprep.subr.mxu0 0.0
      %1111 = vmatpush2.msra.mxu0 0.0
      %1112 = vmatprep.subr.mxu0 0.0
      %1113 = vmatpush2.msra.mxu0 0.0
      %1114 = vmatprep.mubr.f32.mxu0 0.0
      %1115 = vmatmul.mubr.f32.gmra.mxu0 %v1003
      %v1116 = vpop.f32.mrf.mxu0
      %v1117 = vadd.f32 0.0, %v1116
      %v1118 = vpop.f32.mrf.mxu0
      %1119 = vmatprep.mubr.f32.mxu0 0.0
      %1120 = vmatmul.mubr.f32.gmra.mxu0 %v1006
      %v1121 = vpop.f32.mrf.mxu0
      %v1122 = vadd.f32 0.0, %v1121
      %v1123 = vpop.f32.mrf.mxu0
      %1124 = vmatprep.mubr.f32.mxu0 0.0
      %1125 = vmatmul.mubr.f32.gmra.mxu0 %v1009
      %v1126 = vpop.f32.mrf.mxu0
      %v1127 = vadd.f32 0.0, %v1126
      %v1128 = vpop.f32.mrf.mxu0
      %1129 = vmatprep.mubr.f32.mxu0 0.0
      %1130 = vmatmul.mubr.f32.gmra.mxu0 %v1012
      %v1131 = vpop.f32.mrf.mxu0
      %v1132 = vadd.f32 0.0, %v1131
      %v1133 = vpop.f32.mrf.mxu0
      %1134 = vmatprep.mubr.f32.mxu0 0.0
      %1135 = vmatmul.mubr.f32.gmra.mxu0 %v1015
      %v1136 = vpop.f32.mrf.mxu0
      %v1137 = vadd.f32 0.0, %v1136
      %v1138 = vpop.f32.mrf.mxu0
      %1139 = vmatprep.mubr.f32.mxu0 0.0
      %1140 = vmatmul.mubr.f32.gmra.mxu0 %v1018
      %v1141 = vpop.f32.mrf.mxu0
      %v1142 = vadd.f32 0.0, %v1141
      %v1143 = vpop.f32.mrf.mxu0
      %1144 = vmatprep.mubr.f32.mxu0 0.0
      %1145 = vmatmul.mubr.f32.gmra.mxu0 %v1021
      %v1146 = vpop.f32.mrf.mxu0
      %v1147 = vadd.f32 0.0, %v1146
      %v1148 = vpop.f32.mrf.mxu0
      %1149 = vmatprep.mubr.f32.mxu0 0.0
      %1150 = vmatmul.mubr.f32.gmra.mxu0 %v1024
      %v1151 = vpop.f32.mrf.mxu0
      %v1152 = vadd.f32 0.0, %v1151
      %v1153 = vpop.f32.mrf.mxu0
      %1154 = vmatprep.mubr.f32.mxu0 0.0
      %1155 = vmatmul.mubr.f32.gmra.mxu0 %v1027
      %v1156 = vpop.f32.mrf.mxu0
      %v1157 = vadd.f32 0.0, %v1156
      %v1158 = vpop.f32.mrf.mxu0
      %1159 = vmatprep.mubr.f32.mxu0 0.0
      %1160 = vmatmul.mubr.f32.gmra.mxu0 %v1030
      %v1161 = vpop.f32.mrf.mxu0
      %v1162 = vadd.f32 0.0, %v1161
      %v1163 = vpop.f32.mrf.mxu0
      %1164 = vmatprep.mubr.f32.mxu0 0.0
      %1165 = vmatmul.mubr.f32.gmra.mxu0 %v1033
      %v1166 = vpop.f32.mrf.mxu0
      %v1167 = vadd.f32 0.0, %v1166
      %v1168 = vpop.f32.mrf.mxu0
      %1169 = vmatprep.mubr.f32.mxu0 0.0
      %1170 = vmatmul.mubr.f32.gmra.mxu0 %v1036
      %v1171 = vpop.f32.mrf.mxu0
      %v1172 = vadd.f32 0.0, %v1171
      %v1173 = vpop.f32.mrf.mxu0
      %1174 = vmatprep.mubr.f32.mxu0 0.0
      %1175 = vmatmul.mubr.f32.gmra.mxu0 %v1039
      %v1176 = vpop.f32.mrf.mxu0
      %v1177 = vadd.f32 0.0, %v1176
      %v1178 = vpop.f32.mrf.mxu0
      %1179 = vmatprep.mubr.f32.mxu0 0.0
      %1180 = vmatmul.mubr.f32.gmra.mxu0 %v1042
      %v1181 = vpop.f32.mrf.mxu0
      %v1182 = vadd.f32 0.0, %v1181
      %v1183 = vpop.f32.mrf.mxu0
      %1184 = vmatprep.mubr.f32.mxu0 0.0
      %1185 = vmatmul.mubr.f32.gmra.mxu0 %v1045
      %v1186 = vpop.f32.mrf.mxu0
      %v1187 = vadd.f32 0.0, %v1186
      %v1188 = vpop.f32.mrf.mxu0
      %1189 = vmatprep.mubr.f32.mxu0 0.0
      %1190 = vmatmul.mubr.f32.gmra.mxu0 %v1048
      %v1191 = vpop.f32.mrf.mxu0
      %v1192 = vadd.f32 0.0, %v1191
      %v1193 = vpop.f32.mrf.mxu0
      %1194 = vdwg.mxu0
      %1195 = vset.pattern.permute.xlu0 3
      %1196 = vperm.xlu0 %1195, %v201
      %v1197 = vpop.permute.xlu0 %1196
      %1198 = vset.pattern.permute.xlu0 3
      %1199 = vperm.xlu0 %1198, %v202
      %v1200 = vpop.permute.xlu0 %1199
      %1201 = vset.pattern.permute.xlu0 3
      %1202 = vperm.xlu0 %1201, %v203
      %v1203 = vpop.permute.xlu0 %1202
      %1204 = vset.pattern.permute.xlu0 3
      %1205 = vperm.xlu0 %1204, %v204
      %v1206 = vpop.permute.xlu0 %1205
      %1207 = vset.pattern.permute.xlu0 3
      %1208 = vperm.xlu0 %1207, %v205
      %v1209 = vpop.permute.xlu0 %1208
      %1210 = vset.pattern.permute.xlu0 3
      %1211 = vperm.xlu0 %1210, %v206
      %v1212 = vpop.permute.xlu0 %1211
      %1213 = vset.pattern.permute.xlu0 3
      %1214 = vperm.xlu0 %1213, %v207
      %v1215 = vpop.permute.xlu0 %1214
      %1216 = vset.pattern.permute.xlu0 3
      %1217 = vperm.xlu0 %1216, %v208
      %v1218 = vpop.permute.xlu0 %1217
      %1219 = vset.pattern.permute.xlu0 3
      %1220 = vperm.xlu0 %1219, %v209
      %v1221 = vpop.permute.xlu0 %1220
      %1222 = vset.pattern.permute.xlu0 3
      %1223 = vperm.xlu0 %1222, %v210
      %v1224 = vpop.permute.xlu0 %1223
      %1225 = vset.pattern.permute.xlu0 3
      %1226 = vperm.xlu0 %1225, %v211
      %v1227 = vpop.permute.xlu0 %1226
      %1228 = vset.pattern.permute.xlu0 3
      %1229 = vperm.xlu0 %1228, %v212
      %v1230 = vpop.permute.xlu0 %1229
      %1231 = vset.pattern.permute.xlu0 3
      %1232 = vperm.xlu0 %1231, %v213
      %v1233 = vpop.permute.xlu0 %1232
      %1234 = vset.pattern.permute.xlu0 3
      %1235 = vperm.xlu0 %1234, %v214
      %v1236 = vpop.permute.xlu0 %1235
      %1237 = vset.pattern.permute.xlu0 3
      %1238 = vperm.xlu0 %1237, %v215
      %v1239 = vpop.permute.xlu0 %1238
      %1240 = vset.pattern.permute.xlu0 3
      %1241 = vperm.xlu0 %1240, %v216
      %v1242 = vpop.permute.xlu0 %1241
      %vm1243 = vcmp.eq.s32.totalorder %v228, %v1197
      %vm1244 = vcmp.eq.s32.totalorder %v228, %v1200
      %vm1245 = vcmp.eq.s32.totalorder %v228, %v1203
      %vm1246 = vcmp.eq.s32.totalorder %v228, %v1206
      %vm1247 = vcmp.eq.s32.totalorder %v228, %v1209
      %vm1248 = vcmp.eq.s32.totalorder %v228, %v1212
      %vm1249 = vcmp.eq.s32.totalorder %v228, %v1215
      %vm1250 = vcmp.eq.s32.totalorder %v228, %v1218
      %vm1251 = vcmp.eq.s32.totalorder %v228, %v1221
      %vm1252 = vcmp.eq.s32.totalorder %v228, %v1224
      %vm1253 = vcmp.eq.s32.totalorder %v228, %v1227
      %vm1254 = vcmp.eq.s32.totalorder %v228, %v1230
      %vm1255 = vcmp.eq.s32.totalorder %v228, %v1233
      %vm1256 = vcmp.eq.s32.totalorder %v228, %v1236
      %vm1257 = vcmp.eq.s32.totalorder %v228, %v1239
      %vm1258 = vcmp.eq.s32.totalorder %v228, %v1242
      %v1259 = vsel %vm1243, 1.0, 0.0
      %v1260 = vsel %vm1244, 1.0, 0.0
      %v1261 = vsel %vm1245, 1.0, 0.0
      %v1262 = vsel %vm1246, 1.0, 0.0
      %v1263 = vsel %vm1247, 1.0, 0.0
      %v1264 = vsel %vm1248, 1.0, 0.0
      %v1265 = vsel %vm1249, 1.0, 0.0
      %v1266 = vsel %vm1250, 1.0, 0.0
      %v1267 = vsel %vm1251, 1.0, 0.0
      %v1268 = vsel %vm1252, 1.0, 0.0
      %v1269 = vsel %vm1253, 1.0, 0.0
      %v1270 = vsel %vm1254, 1.0, 0.0
      %v1271 = vsel %vm1255, 1.0, 0.0
      %v1272 = vsel %vm1256, 1.0, 0.0
      %v1273 = vsel %vm1257, 1.0, 0.0
      %v1274 = vsel %vm1258, 1.0, 0.0
      %v1276 = vsel %vm728, %v1259, 0
      %v1279 = vsel %vm728, %v1260, 0
      %v1282 = vsel %vm728, %v1261, 0
      %v1285 = vsel %vm728, %v1262, 0
      %v1288 = vsel %vm728, %v1263, 0
      %v1291 = vsel %vm728, %v1264, 0
      %v1294 = vsel %vm728, %v1265, 0
      %v1297 = vsel %vm728, %v1266, 0
      %v1300 = vsel %vm728, %v1267, 0
      %v1303 = vsel %vm728, %v1268, 0
      %v1306 = vsel %vm728, %v1269, 0
      %v1309 = vsel %vm728, %v1270, 0
      %v1312 = vsel %vm728, %v1271, 0
      %v1315 = vsel %vm728, %v1272, 0
      %v1318 = vsel %vm728, %v1273, 0
      %v1321 = vsel %vm728, %v1274, 0
      %1323 = vmatprep.subr.mxu0 0.0
      %1324 = vmatpush1.msra.mxu0 0.0
      %1325 = vmatprep.subr.mxu0 0.0
      %1326 = vmatpush1.msra.mxu0 0.0
      %1327 = vmatprep.subr.mxu0 0.0
      %1328 = vmatpush1.msra.mxu0 0.0
      %1329 = vmatprep.subr.mxu0 0.0
      %1330 = vmatpush1.msra.mxu0 0.0
      %1331 = vmatprep.subr.mxu0 0.0
      %1332 = vmatpush1.msra.mxu0 0.0
      %1333 = vmatprep.subr.mxu0 0.0
      %1334 = vmatpush1.msra.mxu0 0.0
      %1335 = vmatprep.subr.mxu0 0.0
      %1336 = vmatpush1.msra.mxu0 0.0
      %1337 = vmatprep.subr.mxu0 0.0
      %1338 = vmatpush1.msra.mxu0 0.0
      %1339 = vmatprep.subr.mxu0 0.0
      %1340 = vmatpush1.msra.mxu0 %v224
      %1341 = vmatprep.subr.mxu0 0.0
      %1342 = vmatpush1.msra.mxu0 %v223
      %1343 = vmatprep.subr.mxu0 0.0
      %1344 = vmatpush1.msra.mxu0 %v222
      %1345 = vmatprep.subr.mxu0 0.0
      %1346 = vmatpush1.msra.mxu0 %v221
      %1347 = vmatprep.subr.mxu0 0.0
      %1348 = vmatpush1.msra.mxu0 %v220
      %1349 = vmatprep.subr.mxu0 0.0
      %1350 = vmatpush1.msra.mxu0 %v219
      %1351 = vmatprep.subr.mxu0 0.0
      %1352 = vmatpush1.msra.mxu0 %v218
      %1353 = vmatprep.subr.mxu0 0.0
      %1354 = vmatpush1.msra.mxu0 %v217
      %1355 = vmatprep.subr.mxu0 0.0
      %1356 = vmatpush2.msra.mxu0 0.0
      %1357 = vmatprep.subr.mxu0 0.0
      %1358 = vmatpush2.msra.mxu0 0.0
      %1359 = vmatprep.subr.mxu0 0.0
      %1360 = vmatpush2.msra.mxu0 0.0
      %1361 = vmatprep.subr.mxu0 0.0
      %1362 = vmatpush2.msra.mxu0 0.0
      %1363 = vmatprep.subr.mxu0 0.0
      %1364 = vmatpush2.msra.mxu0 0.0
      %1365 = vmatprep.subr.mxu0 0.0
      %1366 = vmatpush2.msra.mxu0 0.0
      %1367 = vmatprep.subr.mxu0 0.0
      %1368 = vmatpush2.msra.mxu0 0.0
      %1369 = vmatprep.subr.mxu0 0.0
      %1370 = vmatpush2.msra.mxu0 0.0
      %1371 = vmatprep.subr.mxu0 0.0
      %1372 = vmatpush2.msra.mxu0 0.0
      %1373 = vmatprep.subr.mxu0 0.0
      %1374 = vmatpush2.msra.mxu0 0.0
      %1375 = vmatprep.subr.mxu0 0.0
      %1376 = vmatpush2.msra.mxu0 0.0
      %1377 = vmatprep.subr.mxu0 0.0
      %1378 = vmatpush2.msra.mxu0 0.0
      %1379 = vmatprep.subr.mxu0 0.0
      %1380 = vmatpush2.msra.mxu0 0.0
      %1381 = vmatprep.subr.mxu0 0.0
      %1382 = vmatpush2.msra.mxu0 0.0
      %1383 = vmatprep.subr.mxu0 0.0
      %1384 = vmatpush2.msra.mxu0 0.0
      %1385 = vmatprep.subr.mxu0 0.0
      %1386 = vmatpush2.msra.mxu0 0.0
      %1387 = vmatprep.mubr.f32.mxu0 0.0
      %1388 = vmatmul.mubr.f32.gmra.mxu0 %v1276
      %v1389 = vpop.f32.mrf.mxu0
      %v1390 = vadd.f32 0.0, %v1389
      %v1391 = vpop.f32.mrf.mxu0
      %1392 = vmatprep.mubr.f32.mxu0 0.0
      %1393 = vmatmul.mubr.f32.gmra.mxu0 %v1279
      %v1394 = vpop.f32.mrf.mxu0
      %v1395 = vadd.f32 0.0, %v1394
      %v1396 = vpop.f32.mrf.mxu0
      %1397 = vmatprep.mubr.f32.mxu0 0.0
      %1398 = vmatmul.mubr.f32.gmra.mxu0 %v1282
      %v1399 = vpop.f32.mrf.mxu0
      %v1400 = vadd.f32 0.0, %v1399
      %v1401 = vpop.f32.mrf.mxu0
      %1402 = vmatprep.mubr.f32.mxu0 0.0
      %1403 = vmatmul.mubr.f32.gmra.mxu0 %v1285
      %v1404 = vpop.f32.mrf.mxu0
      %v1405 = vadd.f32 0.0, %v1404
      %v1406 = vpop.f32.mrf.mxu0
      %1407 = vmatprep.mubr.f32.mxu0 0.0
      %1408 = vmatmul.mubr.f32.gmra.mxu0 %v1288
      %v1409 = vpop.f32.mrf.mxu0
      %v1410 = vadd.f32 0.0, %v1409
      %v1411 = vpop.f32.mrf.mxu0
      %1412 = vmatprep.mubr.f32.mxu0 0.0
      %1413 = vmatmul.mubr.f32.gmra.mxu0 %v1291
      %v1414 = vpop.f32.mrf.mxu0
      %v1415 = vadd.f32 0.0, %v1414
      %v1416 = vpop.f32.mrf.mxu0
      %1417 = vmatprep.mubr.f32.mxu0 0.0
      %1418 = vmatmul.mubr.f32.gmra.mxu0 %v1294
      %v1419 = vpop.f32.mrf.mxu0
      %v1420 = vadd.f32 0.0, %v1419
      %v1421 = vpop.f32.mrf.mxu0
      %1422 = vmatprep.mubr.f32.mxu0 0.0
      %1423 = vmatmul.mubr.f32.gmra.mxu0 %v1297
      %v1424 = vpop.f32.mrf.mxu0
      %v1425 = vadd.f32 0.0, %v1424
      %v1426 = vpop.f32.mrf.mxu0
      %1427 = vmatprep.mubr.f32.mxu0 0.0
      %1428 = vmatmul.mubr.f32.gmra.mxu0 %v1300
      %v1429 = vpop.f32.mrf.mxu0
      %v1430 = vadd.f32 0.0, %v1429
      %v1431 = vpop.f32.mrf.mxu0
      %1432 = vmatprep.mubr.f32.mxu0 0.0
      %1433 = vmatmul.mubr.f32.gmra.mxu0 %v1303
      %v1434 = vpop.f32.mrf.mxu0
      %v1435 = vadd.f32 0.0, %v1434
      %v1436 = vpop.f32.mrf.mxu0
      %1437 = vmatprep.mubr.f32.mxu0 0.0
      %1438 = vmatmul.mubr.f32.gmra.mxu0 %v1306
      %v1439 = vpop.f32.mrf.mxu0
      %v1440 = vadd.f32 0.0, %v1439
      %v1441 = vpop.f32.mrf.mxu0
      %1442 = vmatprep.mubr.f32.mxu0 0.0
      %1443 = vmatmul.mubr.f32.gmra.mxu0 %v1309
      %v1444 = vpop.f32.mrf.mxu0
      %v1445 = vadd.f32 0.0, %v1444
      %v1446 = vpop.f32.mrf.mxu0
      %1447 = vmatprep.mubr.f32.mxu0 0.0
      %1448 = vmatmul.mubr.f32.gmra.mxu0 %v1312
      %v1449 = vpop.f32.mrf.mxu0
      %v1450 = vadd.f32 0.0, %v1449
      %v1451 = vpop.f32.mrf.mxu0
      %1452 = vmatprep.mubr.f32.mxu0 0.0
      %1453 = vmatmul.mubr.f32.gmra.mxu0 %v1315
      %v1454 = vpop.f32.mrf.mxu0
      %v1455 = vadd.f32 0.0, %v1454
      %v1456 = vpop.f32.mrf.mxu0
      %1457 = vmatprep.mubr.f32.mxu0 0.0
      %1458 = vmatmul.mubr.f32.gmra.mxu0 %v1318
      %v1459 = vpop.f32.mrf.mxu0
      %v1460 = vadd.f32 0.0, %v1459
      %v1461 = vpop.f32.mrf.mxu0
      %1462 = vmatprep.mubr.f32.mxu0 0.0
      %1463 = vmatmul.mubr.f32.gmra.mxu0 %v1321
      %v1464 = vpop.f32.mrf.mxu0
      %v1465 = vadd.f32 0.0, %v1464
      %v1466 = vpop.f32.mrf.mxu0
      %1467 = vdwg.mxu0
      %1468 = vset.pattern.permute.xlu0 4
      %1469 = vperm.xlu0 %1468, %v201
      %v1470 = vpop.permute.xlu0 %1469
      %1471 = vset.pattern.permute.xlu0 4
      %1472 = vperm.xlu0 %1471, %v202
      %v1473 = vpop.permute.xlu0 %1472
      %1474 = vset.pattern.permute.xlu0 4
      %1475 = vperm.xlu0 %1474, %v203
      %v1476 = vpop.permute.xlu0 %1475
      %1477 = vset.pattern.permute.xlu0 4
      %1478 = vperm.xlu0 %1477, %v204
      %v1479 = vpop.permute.xlu0 %1478
      %1480 = vset.pattern.permute.xlu0 4
      %1481 = vperm.xlu0 %1480, %v205
      %v1482 = vpop.permute.xlu0 %1481
      %1483 = vset.pattern.permute.xlu0 4
      %1484 = vperm.xlu0 %1483, %v206
      %v1485 = vpop.permute.xlu0 %1484
      %1486 = vset.pattern.permute.xlu0 4
      %1487 = vperm.xlu0 %1486, %v207
      %v1488 = vpop.permute.xlu0 %1487
      %1489 = vset.pattern.permute.xlu0 4
      %1490 = vperm.xlu0 %1489, %v208
      %v1491 = vpop.permute.xlu0 %1490
      %1492 = vset.pattern.permute.xlu0 4
      %1493 = vperm.xlu0 %1492, %v209
      %v1494 = vpop.permute.xlu0 %1493
      %1495 = vset.pattern.permute.xlu0 4
      %1496 = vperm.xlu0 %1495, %v210
      %v1497 = vpop.permute.xlu0 %1496
      %1498 = vset.pattern.permute.xlu0 4
      %1499 = vperm.xlu0 %1498, %v211
      %v1500 = vpop.permute.xlu0 %1499
      %1501 = vset.pattern.permute.xlu0 4
      %1502 = vperm.xlu0 %1501, %v212
      %v1503 = vpop.permute.xlu0 %1502
      %1504 = vset.pattern.permute.xlu0 4
      %1505 = vperm.xlu0 %1504, %v213
      %v1506 = vpop.permute.xlu0 %1505
      %1507 = vset.pattern.permute.xlu0 4
      %1508 = vperm.xlu0 %1507, %v214
      %v1509 = vpop.permute.xlu0 %1508
      %1510 = vset.pattern.permute.xlu0 4
      %1511 = vperm.xlu0 %1510, %v215
      %v1512 = vpop.permute.xlu0 %1511
      %1513 = vset.pattern.permute.xlu0 4
      %1514 = vperm.xlu0 %1513, %v216
      %v1515 = vpop.permute.xlu0 %1514
      %vm1516 = vcmp.eq.s32.totalorder %v228, %v1470
      %vm1517 = vcmp.eq.s32.totalorder %v228, %v1473
      %vm1518 = vcmp.eq.s32.totalorder %v228, %v1476
      %vm1519 = vcmp.eq.s32.totalorder %v228, %v1479
      %vm1520 = vcmp.eq.s32.totalorder %v228, %v1482
      %vm1521 = vcmp.eq.s32.totalorder %v228, %v1485
      %vm1522 = vcmp.eq.s32.totalorder %v228, %v1488
      %vm1523 = vcmp.eq.s32.totalorder %v228, %v1491
      %vm1524 = vcmp.eq.s32.totalorder %v228, %v1494
      %vm1525 = vcmp.eq.s32.totalorder %v228, %v1497
      %vm1526 = vcmp.eq.s32.totalorder %v228, %v1500
      %vm1527 = vcmp.eq.s32.totalorder %v228, %v1503
      %vm1528 = vcmp.eq.s32.totalorder %v228, %v1506
      %vm1529 = vcmp.eq.s32.totalorder %v228, %v1509
      %vm1530 = vcmp.eq.s32.totalorder %v228, %v1512
      %vm1531 = vcmp.eq.s32.totalorder %v228, %v1515
      %v1532 = vsel %vm1516, 1.0, 0.0
      %v1533 = vsel %vm1517, 1.0, 0.0
      %v1534 = vsel %vm1518, 1.0, 0.0
      %v1535 = vsel %vm1519, 1.0, 0.0
      %v1536 = vsel %vm1520, 1.0, 0.0
      %v1537 = vsel %vm1521, 1.0, 0.0
      %v1538 = vsel %vm1522, 1.0, 0.0
      %v1539 = vsel %vm1523, 1.0, 0.0
      %v1540 = vsel %vm1524, 1.0, 0.0
      %v1541 = vsel %vm1525, 1.0, 0.0
      %v1542 = vsel %vm1526, 1.0, 0.0
      %v1543 = vsel %vm1527, 1.0, 0.0
      %v1544 = vsel %vm1528, 1.0, 0.0
      %v1545 = vsel %vm1529, 1.0, 0.0
      %v1546 = vsel %vm1530, 1.0, 0.0
      %v1547 = vsel %vm1531, 1.0, 0.0
      %v1549 = vsel %vm728, %v1532, 0
      %v1552 = vsel %vm728, %v1533, 0
      %v1555 = vsel %vm728, %v1534, 0
      %v1558 = vsel %vm728, %v1535, 0
      %v1561 = vsel %vm728, %v1536, 0
      %v1564 = vsel %vm728, %v1537, 0
      %v1567 = vsel %vm728, %v1538, 0
      %v1570 = vsel %vm728, %v1539, 0
      %v1573 = vsel %vm728, %v1540, 0
      %v1576 = vsel %vm728, %v1541, 0
      %v1579 = vsel %vm728, %v1542, 0
      %v1582 = vsel %vm728, %v1543, 0
      %v1585 = vsel %vm728, %v1544, 0
      %v1588 = vsel %vm728, %v1545, 0
      %v1591 = vsel %vm728, %v1546, 0
      %v1594 = vsel %vm728, %v1547, 0
      %1596 = vmatprep.subr.mxu0 0.0
      %1597 = vmatpush1.msra.mxu0 0.0
      %1598 = vmatprep.subr.mxu0 0.0
      %1599 = vmatpush1.msra.mxu0 0.0
      %1600 = vmatprep.subr.mxu0 0.0
      %1601 = vmatpush1.msra.mxu0 0.0
      %1602 = vmatprep.subr.mxu0 0.0
      %1603 = vmatpush1.msra.mxu0 0.0
      %1604 = vmatprep.subr.mxu0 0.0
      %1605 = vmatpush1.msra.mxu0 0.0
      %1606 = vmatprep.subr.mxu0 0.0
      %1607 = vmatpush1.msra.mxu0 0.0
      %1608 = vmatprep.subr.mxu0 0.0
      %1609 = vmatpush1.msra.mxu0 0.0
      %1610 = vmatprep.subr.mxu0 0.0
      %1611 = vmatpush1.msra.mxu0 0.0
      %1612 = vmatprep.subr.mxu0 0.0
      %1613 = vmatpush1.msra.mxu0 %v224
      %1614 = vmatprep.subr.mxu0 0.0
      %1615 = vmatpush1.msra.mxu0 %v223
      %1616 = vmatprep.subr.mxu0 0.0
      %1617 = vmatpush1.msra.mxu0 %v222
      %1618 = vmatprep.subr.mxu0 0.0
      %1619 = vmatpush1.msra.mxu0 %v221
      %1620 = vmatprep.subr.mxu0 0.0
      %1621 = vmatpush1.msra.mxu0 %v220
      %1622 = vmatprep.subr.mxu0 0.0
      %1623 = vmatpush1.msra.mxu0 %v219
      %1624 = vmatprep.subr.mxu0 0.0
      %1625 = vmatpush1.msra.mxu0 %v218
      %1626 = vmatprep.subr.mxu0 0.0
      %1627 = vmatpush1.msra.mxu0 %v217
      %1628 = vmatprep.subr.mxu0 0.0
      %1629 = vmatpush2.msra.mxu0 0.0
      %1630 = vmatprep.subr.mxu0 0.0
      %1631 = vmatpush2.msra.mxu0 0.0
      %1632 = vmatprep.subr.mxu0 0.0
      %1633 = vmatpush2.msra.mxu0 0.0
      %1634 = vmatprep.subr.mxu0 0.0
      %1635 = vmatpush2.msra.mxu0 0.0
      %1636 = vmatprep.subr.mxu0 0.0
      %1637 = vmatpush2.msra.mxu0 0.0
      %1638 = vmatprep.subr.mxu0 0.0
      %1639 = vmatpush2.msra.mxu0 0.0
      %1640 = vmatprep.subr.mxu0 0.0
      %1641 = vmatpush2.msra.mxu0 0.0
      %1642 = vmatprep.subr.mxu0 0.0
      %1643 = vmatpush2.msra.mxu0 0.0
      %1644 = vmatprep.subr.mxu0 0.0
      %1645 = vmatpush2.msra.mxu0 0.0
      %1646 = vmatprep.subr.mxu0 0.0
      %1647 = vmatpush2.msra.mxu0 0.0
      %1648 = vmatprep.subr.mxu0 0.0
      %1649 = vmatpush2.msra.mxu0 0.0
      %1650 = vmatprep.subr.mxu0 0.0
      %1651 = vmatpush2.msra.mxu0 0.0
      %1652 = vmatprep.subr.mxu0 0.0
      %1653 = vmatpush2.msra.mxu0 0.0
      %1654 = vmatprep.subr.mxu0 0.0
      %1655 = vmatpush2.msra.mxu0 0.0
      %1656 = vmatprep.subr.mxu0 0.0
      %1657 = vmatpush2.msra.mxu0 0.0
      %1658 = vmatprep.subr.mxu0 0.0
      %1659 = vmatpush2.msra.mxu0 0.0
      %1660 = vmatprep.mubr.f32.mxu0 0.0
      %1661 = vmatmul.mubr.f32.gmra.mxu0 %v1549
      %v1662 = vpop.f32.mrf.mxu0
      %v1663 = vadd.f32 0.0, %v1662
      %v1664 = vpop.f32.mrf.mxu0
      %1665 = vmatprep.mubr.f32.mxu0 0.0
      %1666 = vmatmul.mubr.f32.gmra.mxu0 %v1552
      %v1667 = vpop.f32.mrf.mxu0
      %v1668 = vadd.f32 0.0, %v1667
      %v1669 = vpop.f32.mrf.mxu0
      %1670 = vmatprep.mubr.f32.mxu0 0.0
      %1671 = vmatmul.mubr.f32.gmra.mxu0 %v1555
      %v1672 = vpop.f32.mrf.mxu0
      %v1673 = vadd.f32 0.0, %v1672
      %v1674 = vpop.f32.mrf.mxu0
      %1675 = vmatprep.mubr.f32.mxu0 0.0
      %1676 = vmatmul.mubr.f32.gmra.mxu0 %v1558
      %v1677 = vpop.f32.mrf.mxu0
      %v1678 = vadd.f32 0.0, %v1677
      %v1679 = vpop.f32.mrf.mxu0
      %1680 = vmatprep.mubr.f32.mxu0 0.0
      %1681 = vmatmul.mubr.f32.gmra.mxu0 %v1561
      %v1682 = vpop.f32.mrf.mxu0
      %v1683 = vadd.f32 0.0, %v1682
      %v1684 = vpop.f32.mrf.mxu0
      %1685 = vmatprep.mubr.f32.mxu0 0.0
      %1686 = vmatmul.mubr.f32.gmra.mxu0 %v1564
      %v1687 = vpop.f32.mrf.mxu0
      %v1688 = vadd.f32 0.0, %v1687
      %v1689 = vpop.f32.mrf.mxu0
      %1690 = vmatprep.mubr.f32.mxu0 0.0
      %1691 = vmatmul.mubr.f32.gmra.mxu0 %v1567
      %v1692 = vpop.f32.mrf.mxu0
      %v1693 = vadd.f32 0.0, %v1692
      %v1694 = vpop.f32.mrf.mxu0
      %1695 = vmatprep.mubr.f32.mxu0 0.0
      %1696 = vmatmul.mubr.f32.gmra.mxu0 %v1570
      %v1697 = vpop.f32.mrf.mxu0
      %v1698 = vadd.f32 0.0, %v1697
      %v1699 = vpop.f32.mrf.mxu0
      %1700 = vmatprep.mubr.f32.mxu0 0.0
      %1701 = vmatmul.mubr.f32.gmra.mxu0 %v1573
      %v1702 = vpop.f32.mrf.mxu0
      %v1703 = vadd.f32 0.0, %v1702
      %v1704 = vpop.f32.mrf.mxu0
      %1705 = vmatprep.mubr.f32.mxu0 0.0
      %1706 = vmatmul.mubr.f32.gmra.mxu0 %v1576
      %v1707 = vpop.f32.mrf.mxu0
      %v1708 = vadd.f32 0.0, %v1707
      %v1709 = vpop.f32.mrf.mxu0
      %1710 = vmatprep.mubr.f32.mxu0 0.0
      %1711 = vmatmul.mubr.f32.gmra.mxu0 %v1579
      %v1712 = vpop.f32.mrf.mxu0
      %v1713 = vadd.f32 0.0, %v1712
      %v1714 = vpop.f32.mrf.mxu0
      %1715 = vmatprep.mubr.f32.mxu0 0.0
      %1716 = vmatmul.mubr.f32.gmra.mxu0 %v1582
      %v1717 = vpop.f32.mrf.mxu0
      %v1718 = vadd.f32 0.0, %v1717
      %v1719 = vpop.f32.mrf.mxu0
      %1720 = vmatprep.mubr.f32.mxu0 0.0
      %1721 = vmatmul.mubr.f32.gmra.mxu0 %v1585
      %v1722 = vpop.f32.mrf.mxu0
      %v1723 = vadd.f32 0.0, %v1722
      %v1724 = vpop.f32.mrf.mxu0
      %1725 = vmatprep.mubr.f32.mxu0 0.0
      %1726 = vmatmul.mubr.f32.gmra.mxu0 %v1588
      %v1727 = vpop.f32.mrf.mxu0
      %v1728 = vadd.f32 0.0, %v1727
      %v1729 = vpop.f32.mrf.mxu0
      %1730 = vmatprep.mubr.f32.mxu0 0.0
      %1731 = vmatmul.mubr.f32.gmra.mxu0 %v1591
      %v1732 = vpop.f32.mrf.mxu0
      %v1733 = vadd.f32 0.0, %v1732
      %v1734 = vpop.f32.mrf.mxu0
      %1735 = vmatprep.mubr.f32.mxu0 0.0
      %1736 = vmatmul.mubr.f32.gmra.mxu0 %v1594
      %v1737 = vpop.f32.mrf.mxu0
      %v1738 = vadd.f32 0.0, %v1737
      %v1739 = vpop.f32.mrf.mxu0
      %1740 = vdwg.mxu0
      %v1741 = vsub.f32 %v1663, %v1390
      %v1742 = vsub.f32 %v1668, %v1395
      %v1743 = vsub.f32 %v1673, %v1400
      %v1744 = vsub.f32 %v1678, %v1405
      %v1745 = vsub.f32 %v1683, %v1410
      %v1746 = vsub.f32 %v1688, %v1415
      %v1747 = vsub.f32 %v1693, %v1420
      %v1748 = vsub.f32 %v1698, %v1425
      %v1749 = vsub.f32 %v1703, %v1430
      %v1750 = vsub.f32 %v1708, %v1435
      %v1751 = vsub.f32 %v1713, %v1440
      %v1752 = vsub.f32 %v1718, %v1445
      %v1753 = vsub.f32 %v1723, %v1450
      %v1754 = vsub.f32 %v1728, %v1455
      %v1755 = vsub.f32 %v1733, %v1460
      %v1756 = vsub.f32 %v1738, %v1465
      %v1757 = vsub.f32 %v1741, %v1117
      %v1758 = vsub.f32 %v1742, %v1122
      %v1759 = vsub.f32 %v1743, %v1127
      %v1760 = vsub.f32 %v1744, %v1132
      %v1761 = vsub.f32 %v1745, %v1137
      %v1762 = vsub.f32 %v1746, %v1142
      %v1763 = vsub.f32 %v1747, %v1147
      %v1764 = vsub.f32 %v1748, %v1152
      %v1765 = vsub.f32 %v1749, %v1157
      %v1766 = vsub.f32 %v1750, %v1162
      %v1767 = vsub.f32 %v1751, %v1167
      %v1768 = vsub.f32 %v1752, %v1172
      %v1769 = vsub.f32 %v1753, %v1177
      %v1770 = vsub.f32 %v1754, %v1182
      %v1771 = vsub.f32 %v1755, %v1187
      %v1772 = vsub.f32 %v1756, %v1192
      %v1773 = vadd.f32 %v1757, %v844
      %v1774 = vadd.f32 %v1758, %v849
      %v1775 = vadd.f32 %v1759, %v854
      %v1776 = vadd.f32 %v1760, %v859
      %v1777 = vadd.f32 %v1761, %v864
      %v1778 = vadd.f32 %v1762, %v869
      %v1779 = vadd.f32 %v1763, %v874
      %v1780 = vadd.f32 %v1764, %v879
      %v1781 = vadd.f32 %v1765, %v884
      %v1782 = vadd.f32 %v1766, %v889
      %v1783 = vadd.f32 %v1767, %v894
      %v1784 = vadd.f32 %v1768, %v899
      %v1785 = vadd.f32 %v1769, %v904
      %v1786 = vadd.f32 %v1770, %v909
      %v1787 = vadd.f32 %v1771, %v914
      %v1788 = vadd.f32 %v1772, %v919
      %v1789 = vmul.f32 %v1773, %v425
      %v1790 = vmul.f32 %v1774, %v430
      %v1791 = vmul.f32 %v1775, %v435
      %v1792 = vmul.f32 %v1776, %v440
      %v1793 = vmul.f32 %v1777, %v445
      %v1794 = vmul.f32 %v1778, %v450
      %v1795 = vmul.f32 %v1779, %v455
      %v1796 = vmul.f32 %v1780, %v460
      %v1797 = vmul.f32 %v1781, %v465
      %v1798 = vmul.f32 %v1782, %v470
      %v1799 = vmul.f32 %v1783, %v475
      %v1800 = vmul.f32 %v1784, %v480
      %v1801 = vmul.f32 %v1785, %v485
      %v1802 = vmul.f32 %v1786, %v490
      %v1803 = vmul.f32 %v1787, %v495
      %v1804 = vmul.f32 %v1788, %v500
      %v1805 = vmul.f32 %v1390, %v1663
      %v1806 = vmul.f32 %v1395, %v1668
      %v1807 = vmul.f32 %v1400, %v1673
      %v1808 = vmul.f32 %v1405, %v1678
      %v1809 = vmul.f32 %v1410, %v1683
      %v1810 = vmul.f32 %v1415, %v1688
      %v1811 = vmul.f32 %v1420, %v1693
      %v1812 = vmul.f32 %v1425, %v1698
      %v1813 = vmul.f32 %v1430, %v1703
      %v1814 = vmul.f32 %v1435, %v1708
      %v1815 = vmul.f32 %v1440, %v1713
      %v1816 = vmul.f32 %v1445, %v1718
      %v1817 = vmul.f32 %v1450, %v1723
      %v1818 = vmul.f32 %v1455, %v1728
      %v1819 = vmul.f32 %v1460, %v1733
      %v1820 = vmul.f32 %v1465, %v1738
      %v1821 = vmul.f32 %v844, %v1117
      %v1822 = vmul.f32 %v849, %v1122
      %v1823 = vmul.f32 %v854, %v1127
      %v1824 = vmul.f32 %v859, %v1132
      %v1825 = vmul.f32 %v864, %v1137
      %v1826 = vmul.f32 %v869, %v1142
      %v1827 = vmul.f32 %v874, %v1147
      %v1828 = vmul.f32 %v879, %v1152
      %v1829 = vmul.f32 %v884, %v1157
      %v1830 = vmul.f32 %v889, %v1162
      %v1831 = vmul.f32 %v894, %v1167
      %v1832 = vmul.f32 %v899, %v1172
      %v1833 = vmul.f32 %v904, %v1177
      %v1834 = vmul.f32 %v909, %v1182
      %v1835 = vmul.f32 %v914, %v1187
      %v1836 = vmul.f32 %v919, %v1192
      %v1837 = vsub.f32 %v1805, %v1821
      %v1838 = vsub.f32 %v1806, %v1822
      %v1839 = vsub.f32 %v1807, %v1823
      %v1840 = vsub.f32 %v1808, %v1824
      %v1841 = vsub.f32 %v1809, %v1825
      %v1842 = vsub.f32 %v1810, %v1826
      %v1843 = vsub.f32 %v1811, %v1827
      %v1844 = vsub.f32 %v1812, %v1828
      %v1845 = vsub.f32 %v1813, %v1829
      %v1846 = vsub.f32 %v1814, %v1830
      %v1847 = vsub.f32 %v1815, %v1831
      %v1848 = vsub.f32 %v1816, %v1832
      %v1849 = vsub.f32 %v1817, %v1833
      %v1850 = vsub.f32 %v1818, %v1834
      %v1851 = vsub.f32 %v1819, %v1835
      %v1852 = vsub.f32 %v1820, %v1836
      %v1853 = vmul.f32 %v1837, %v570
      %v1854 = vmul.f32 %v1838, %v575
      %v1855 = vmul.f32 %v1839, %v580
      %v1856 = vmul.f32 %v1840, %v585
      %v1857 = vmul.f32 %v1841, %v590
      %v1858 = vmul.f32 %v1842, %v595
      %v1859 = vmul.f32 %v1843, %v600
      %v1860 = vmul.f32 %v1844, %v605
      %v1861 = vmul.f32 %v1845, %v610
      %v1862 = vmul.f32 %v1846, %v615
      %v1863 = vmul.f32 %v1847, %v620
      %v1864 = vmul.f32 %v1848, %v625
      %v1865 = vmul.f32 %v1849, %v630
      %v1866 = vmul.f32 %v1850, %v635
      %v1867 = vmul.f32 %v1851, %v640
      %v1868 = vmul.f32 %v1852, %v645
      %v1869 = vadd.f32 %v1789, %v1853
      %v1870 = vadd.f32 %v1790, %v1854
      %v1871 = vadd.f32 %v1791, %v1855
      %v1872 = vadd.f32 %v1792, %v1856
      %v1873 = vadd.f32 %v1793, %v1857
      %v1874 = vadd.f32 %v1794, %v1858
      %v1875 = vadd.f32 %v1795, %v1859
      %v1876 = vadd.f32 %v1796, %v1860
      %v1877 = vadd.f32 %v1797, %v1861
      %v1878 = vadd.f32 %v1798, %v1862
      %v1879 = vadd.f32 %v1799, %v1863
      %v1880 = vadd.f32 %v1800, %v1864
      %v1881 = vadd.f32 %v1801, %v1865
      %v1882 = vadd.f32 %v1802, %v1866
      %v1883 = vadd.f32 %v1803, %v1867
      %v1884 = vadd.f32 %v1804, %v1868
      %1885 = vadd.xlane.f32.xlu0 %v1869
      %v1886 = vpop.xlane.xlu0 %1885
      %1887 = vadd.xlane.f32.xlu0 %v1870
      %v1888 = vpop.xlane.xlu0 %1887
      %1889 = vadd.xlane.f32.xlu0 %v1871
      %v1890 = vpop.xlane.xlu0 %1889
      %1891 = vadd.xlane.f32.xlu0 %v1872
      %v1892 = vpop.xlane.xlu0 %1891
      %1893 = vadd.xlane.f32.xlu0 %v1873
      %v1894 = vpop.xlane.xlu0 %1893
      %1895 = vadd.xlane.f32.xlu0 %v1874
      %v1896 = vpop.xlane.xlu0 %1895
      %1897 = vadd.xlane.f32.xlu0 %v1875
      %v1898 = vpop.xlane.xlu0 %1897
      %1899 = vadd.xlane.f32.xlu0 %v1876
      %v1900 = vpop.xlane.xlu0 %1899
      %1901 = vadd.xlane.f32.xlu0 %v1877
      %v1902 = vpop.xlane.xlu0 %1901
      %1903 = vadd.xlane.f32.xlu0 %v1878
      %v1904 = vpop.xlane.xlu0 %1903
      %1905 = vadd.xlane.f32.xlu0 %v1879
      %v1906 = vpop.xlane.xlu0 %1905
      %1907 = vadd.xlane.f32.xlu0 %v1880
      %v1908 = vpop.xlane.xlu0 %1907
      %1909 = vadd.xlane.f32.xlu0 %v1881
      %v1910 = vpop.xlane.xlu0 %1909
      %1911 = vadd.xlane.f32.xlu0 %v1882
      %v1912 = vpop.xlane.xlu0 %1911
      %1913 = vadd.xlane.f32.xlu0 %v1883
      %v1914 = vpop.xlane.xlu0 %1913
      %1915 = vadd.xlane.f32.xlu0 %v1884
      %v1916 = vpop.xlane.xlu0 %1915
      %v1917 = vmax.f32 %v1886, 0.0
      %v1918 = vmax.f32 %v1888, 0.0
      %v1919 = vmax.f32 %v1890, 0.0
      %v1920 = vmax.f32 %v1892, 0.0
      %v1921 = vmax.f32 %v1894, 0.0
      %v1922 = vmax.f32 %v1896, 0.0
      %v1923 = vmax.f32 %v1898, 0.0
      %v1924 = vmax.f32 %v1900, 0.0
      %v1925 = vmax.f32 %v1902, 0.0
      %v1926 = vmax.f32 %v1904, 0.0
      %v1927 = vmax.f32 %v1906, 0.0
      %v1928 = vmax.f32 %v1908, 0.0
      %v1929 = vmax.f32 %v1910, 0.0
      %v1930 = vmax.f32 %v1912, 0.0
      %v1931 = vmax.f32 %v1914, 0.0
      %v1932 = vmax.f32 %v1916, 0.0
      %v1933 = vand.u32 2147483647, %v1886
      %v1934 = vand.u32 2147483647, %v1888
      %v1935 = vand.u32 2147483647, %v1890
      %v1936 = vand.u32 2147483647, %v1892
      %v1937 = vand.u32 2147483647, %v1894
      %v1938 = vand.u32 2147483647, %v1896
      %v1939 = vand.u32 2147483647, %v1898
      %v1940 = vand.u32 2147483647, %v1900
      %v1941 = vand.u32 2147483647, %v1902
      %v1942 = vand.u32 2147483647, %v1904
      %v1943 = vand.u32 2147483647, %v1906
      %v1944 = vand.u32 2147483647, %v1908
      %v1945 = vand.u32 2147483647, %v1910
      %v1946 = vand.u32 2147483647, %v1912
      %v1947 = vand.u32 2147483647, %v1914
      %v1948 = vand.u32 2147483647, %v1916
      %v1949 = vsub.f32 0.0, %v1933
      %v1950 = vsub.f32 0.0, %v1934
      %v1951 = vsub.f32 0.0, %v1935
      %v1952 = vsub.f32 0.0, %v1936
      %v1953 = vsub.f32 0.0, %v1937
      %v1954 = vsub.f32 0.0, %v1938
      %v1955 = vsub.f32 0.0, %v1939
      %v1956 = vsub.f32 0.0, %v1940
      %v1957 = vsub.f32 0.0, %v1941
      %v1958 = vsub.f32 0.0, %v1942
      %v1959 = vsub.f32 0.0, %v1943
      %v1960 = vsub.f32 0.0, %v1944
      %v1961 = vsub.f32 0.0, %v1945
      %v1962 = vsub.f32 0.0, %v1946
      %v1963 = vsub.f32 0.0, %v1947
      %v1964 = vsub.f32 0.0, %v1948
      %v1965 = vmul.f32 %v1949, 1.442695
      %v1966 = vpow.pop %v1965
      %v1967 = vmul.f32 %v1950, 1.442695
      %v1968 = vpow.pop %v1967
      %v1969 = vmul.f32 %v1951, 1.442695
      %v1970 = vpow.pop %v1969
      %v1971 = vmul.f32 %v1952, 1.442695
      %v1972 = vpow.pop %v1971
      %v1973 = vmul.f32 %v1953, 1.442695
      %v1974 = vpow.pop %v1973
      %v1975 = vmul.f32 %v1954, 1.442695
      %v1976 = vpow.pop %v1975
      %v1977 = vmul.f32 %v1955, 1.442695
      %v1978 = vpow.pop %v1977
      %v1979 = vmul.f32 %v1956, 1.442695
      %v1980 = vpow.pop %v1979
      %v1981 = vmul.f32 %v1957, 1.442695
      %v1982 = vpow.pop %v1981
      %v1983 = vmul.f32 %v1958, 1.442695
      %v1984 = vpow.pop %v1983
      %v1985 = vmul.f32 %v1959, 1.442695
      %v1986 = vpow.pop %v1985
      %v1987 = vmul.f32 %v1960, 1.442695
      %v1988 = vpow.pop %v1987
      %v1989 = vmul.f32 %v1961, 1.442695
      %v1990 = vpow.pop %v1989
      %v1991 = vmul.f32 %v1962, 1.442695
      %v1992 = vpow.pop %v1991
      %v1993 = vmul.f32 %v1963, 1.442695
      %v1994 = vpow.pop %v1993
      %v1995 = vmul.f32 %v1964, 1.442695
      %v1996 = vpow.pop %v1995
      %v1997 = vadd.f32 %v1966, 1.0
      %v1998 = vadd.f32 %v1968, 1.0
      %v1999 = vadd.f32 %v1970, 1.0
      %v2000 = vadd.f32 %v1972, 1.0
      %v2001 = vadd.f32 %v1974, 1.0
      %v2002 = vadd.f32 %v1976, 1.0
      %v2003 = vadd.f32 %v1978, 1.0
      %v2004 = vadd.f32 %v1980, 1.0
      %v2005 = vadd.f32 %v1982, 1.0
      %v2006 = vadd.f32 %v1984, 1.0
      %v2007 = vadd.f32 %v1986, 1.0
      %v2008 = vadd.f32 %v1988, 1.0
      %v2009 = vadd.f32 %v1990, 1.0
      %v2010 = vadd.f32 %v1992, 1.0
      %v2011 = vadd.f32 %v1994, 1.0
      %v2012 = vadd.f32 %v1996, 1.0
      %v2013 = vlog2.pop %v1997
      %v2014 = vmul.f32 %v2013, 0.6931472
      %v2015 = vlog2.pop %v1998
      %v2016 = vmul.f32 %v2015, 0.6931472
      %v2017 = vlog2.pop %v1999
      %v2018 = vmul.f32 %v2017, 0.6931472
      %v2019 = vlog2.pop %v2000
      %v2020 = vmul.f32 %v2019, 0.6931472
      %v2021 = vlog2.pop %v2001
      %v2022 = vmul.f32 %v2021, 0.6931472
      %v2023 = vlog2.pop %v2002
      %v2024 = vmul.f32 %v2023, 0.6931472
      %v2025 = vlog2.pop %v2003
      %v2026 = vmul.f32 %v2025, 0.6931472
      %v2027 = vlog2.pop %v2004
      %v2028 = vmul.f32 %v2027, 0.6931472
      %v2029 = vlog2.pop %v2005
      %v2030 = vmul.f32 %v2029, 0.6931472
      %v2031 = vlog2.pop %v2006
      %v2032 = vmul.f32 %v2031, 0.6931472
      %v2033 = vlog2.pop %v2007
      %v2034 = vmul.f32 %v2033, 0.6931472
      %v2035 = vlog2.pop %v2008
      %v2036 = vmul.f32 %v2035, 0.6931472
      %v2037 = vlog2.pop %v2009
      %v2038 = vmul.f32 %v2037, 0.6931472
      %v2039 = vlog2.pop %v2010
      %v2040 = vmul.f32 %v2039, 0.6931472
      %v2041 = vlog2.pop %v2011
      %v2042 = vmul.f32 %v2041, 0.6931472
      %v2043 = vlog2.pop %v2012
      %v2044 = vmul.f32 %v2043, 0.6931472
      %v2045 = vadd.f32 %v1917, %v2014
      %v2046 = vadd.f32 %v1918, %v2016
      %v2047 = vadd.f32 %v1919, %v2018
      %v2048 = vadd.f32 %v1920, %v2020
      %v2049 = vadd.f32 %v1921, %v2022
      %v2050 = vadd.f32 %v1922, %v2024
      %v2051 = vadd.f32 %v1923, %v2026
      %v2052 = vadd.f32 %v1924, %v2028
      %v2053 = vadd.f32 %v1925, %v2030
      %v2054 = vadd.f32 %v1926, %v2032
      %v2055 = vadd.f32 %v1927, %v2034
      %v2056 = vadd.f32 %v1928, %v2036
      %v2057 = vadd.f32 %v1929, %v2038
      %v2058 = vadd.f32 %v1930, %v2040
      %v2059 = vadd.f32 %v1931, %v2042
      %v2060 = vadd.f32 %v1932, %v2044
      %vm2061 = vcmask 7168
      %2062 = vst.msk [vmem:[%s199] sm:$0xff] %vm2061, %v2045
      %2063 = vst.msk [vmem:[%s199 + $0x8] sm:$0xff] %vm2061, %v2046
      %2064 = vst.msk [vmem:[%s199 + $0x10] sm:$0xff] %vm2061, %v2047
      %2065 = vst.msk [vmem:[%s199 + $0x18] sm:$0xff] %vm2061, %v2048
      %2066 = vst.msk [vmem:[%s199 + $0x20] sm:$0xff] %vm2061, %v2049
      %2067 = vst.msk [vmem:[%s199 + $0x28] sm:$0xff] %vm2061, %v2050
      %2068 = vst.msk [vmem:[%s199 + $0x30] sm:$0xff] %vm2061, %v2051
      %2069 = vst.msk [vmem:[%s199 + $0x38] sm:$0xff] %vm2061, %v2052
      %2070 = vst.msk [vmem:[%s199 + $0x40] sm:$0xff] %vm2061, %v2053
      %2071 = vst.msk [vmem:[%s199 + $0x48] sm:$0xff] %vm2061, %v2054
      %2072 = vst.msk [vmem:[%s199 + $0x50] sm:$0xff] %vm2061, %v2055
      %2073 = vst.msk [vmem:[%s199 + $0x58] sm:$0xff] %vm2061, %v2056
      %2074 = vst.msk [vmem:[%s199 + $0x60] sm:$0xff] %vm2061, %v2057
      %2075 = vst.msk [vmem:[%s199 + $0x68] sm:$0xff] %vm2061, %v2058
      %2076 = vst.msk [vmem:[%s199 + $0x70] sm:$0xff] %vm2061, %v2059
      %2077 = vst.msk [vmem:[%s199 + $0x78] sm:$0xff] %vm2061, %v2060
      %s2078 = smul.u32 16, %s15
      %p2079 = scmp.lt.s32.totalorder %s2078, 31
      %s2080 = scalar_select %p2079, %s2078, 31
      %s2081 = smul.addr %s2080, 8
      %s2082 = scalar_lea.vmem %s4, %s2081
      // Predicated region
      $region37: #{tpu_custom_call.1} parent=35 // pred_check
        %p2083 = pneg %p122
      $region38: #{tpu_custom_call.1} parent=35 // pred_check_branch
        %2085 = sbr.rel (%p2083) target = $region40
      $region39: #{tpu_custom_call.1} parent=35 // pred_region
        %s2086 = smul.u32 16, %s15
      $region40: #{tpu_custom_call.1} parent=35 // pred_fallthru
        _
    $region36: #{tpu_custom_call.1} parent=5 // pred_fallthru
      _
    %p2087 = scmp.le.s32.totalorder 2, %s10
    // Predicated region
    $region41: #{tpu_custom_call.1} parent=5 // pred_check
      %p2088 = pneg %p2087
    $region42: #{tpu_custom_call.1} parent=5 // pred_check_branch
      %2090 = sbr.rel (%p2088) target = $region44
    $region43: #{tpu_custom_call.1} parent=5 // pred_region
      %s2091 = ssub.s32 %s10, 2
      // Predicated region
      $region45: #{tpu_custom_call.1} parent=43 // pred_check
        %p2092 = pneg %p128
      $region46: #{tpu_custom_call.1} parent=43 // pred_check_branch
        %2094 = sbr.rel (%p2092) target = $region48
      $region47: #{tpu_custom_call.1} parent=43 // pred_region
        %s2095 = smul.u32 16, %s16
        %p2096 = scmp.lt.s32.totalorder %s2095, 31
        %s2097 = scalar_select %p2096, %s2095, 31
        %s2098 = smul.addr %s2097, 8
        %s2099 = scalar_lea.vmem %s4, %s2098
      $region48: #{tpu_custom_call.1} parent=43 // pred_fallthru
        _
    $region44: #{tpu_custom_call.1} parent=5 // pred_fallthru
      _
  $region6: #{tpu_custom_call.1} parent=0 // loop_footer
    %s14 = sadd.s32 1, %s10
  $region7: #{tpu_custom_call.1} parent=0 // loop_footer_branch
    %9 = sbr.rel target = $region3
  $region8: #{tpu_custom_call.1} parent=0 // loop_exit
    _

</llo_original>
